<compile_context>
chip_gen: v7x
topology: tpu7x:2x2x1
jax: 0.10.0
libtpu: 0.0.40
codegen_flags: <defaults>
</compile_context>

<pallas_src>
import functools

import jax
import jax.numpy as jnp
from jax import lax
from jax.experimental import pallas as pl
from jax.experimental.pallas import tpu as pltpu

N_HIDDEN = 100      # fixed inside RNNModel.__init__
_LANES = 128
_SUBLANES = 8


def _round_up(n, m):
    return ((n + m - 1) // m) * m


def _pick_t_tile(T, cap=32):
    """Largest divisor of T not exceeding `cap` (time-tile for the sequential grid)."""
    for cand in range(min(T, cap), 0, -1):
        if T % cand == 0:
            return cand
    return T


# ---------------------------------------------------------------------------
# Fused kernel: all RNN_RELU layers + Linear + LogSoftmax over one time tile.
#
# refs (in order):
#   x_ref      : (T_tile*B_pad, F_pad)  flattened time-major input tile
#   w_ih_0, w_hh_0, ..., w_ih_{L-1}, w_hh_{L-1}
#                (in_pad, H_pad), (H_pad, H_pad)   pre-transposed, zero-padded
#   w_lin_ref  : (H_pad, O_pad)
#   b_lin_ref  : (1, O_pad)
#   out_ref    : (T_tile*B_pad, O_pad)  log-probabilities
#   seq_ref    : (T_tile*B_pad, H_pad)  VMEM scratch: per-tile hidden sequence
#   h_ref      : (L, B_pad, H_pad)      VMEM scratch: carried hidden state per layer
# ---------------------------------------------------------------------------
def _make_fused_kernel(n_layers, t_tile, b_pad, h_pad, o_pad, n_output):
    def kernel(*refs):
        x_ref = refs[0]
        w_refs = refs[1:1 + 2 * n_layers]
        w_lin_ref = refs[1 + 2 * n_layers]
        b_lin_ref = refs[2 + 2 * n_layers]
        out_ref = refs[3 + 2 * n_layers]
        seq_ref = refs[4 + 2 * n_layers]
        h_ref = refs[5 + 2 * n_layers]

        # h_0 = zeros for every layer (only at the first time tile).
        @pl.when(pl.program_id(0) == 0)
        def _init():
            h_ref[...] = jnp.zeros_like(h_ref)

        for l in range(n_layers):
            w_ih = w_refs[2 * l][...]
            w_hh = w_refs[2 * l + 1][...]

            # Hoisted input->hidden contribution for the whole tile: one big MXU matmul.
            src = x_ref[...] if l == 0 else seq_ref[...]
            seq_ref[...] = jnp.dot(src, w_ih, preferred_element_type=jnp.float32)

            def step(t, h_prev, _w_hh=w_hh):
                row = pl.multiple_of(t * b_pad, b_pad)
                pre = seq_ref[pl.ds(row, b_pad), :] + jnp.dot(
                    h_prev, _w_hh, preferred_element_type=jnp.float32)
                h = jnp.maximum(pre, 0.0)                 # RNN_RELU nonlinearity
                seq_ref[pl.ds(row, b_pad), :] = h          # aligned (8, 128) store
                return h

            h_last = lax.fori_loop(0, t_tile, step, h_ref[l], unroll=True)
            h_ref[l] = h_last                              # carry state to next tile

        # Head: Linear + LogSoftmax, fused as the tile epilogue (lane-dense output).
        logits = jnp.dot(seq_ref[...], w_lin_ref[...],
                         preferred_element_type=jnp.float32) + b_lin_ref[...]
        lane = lax.broadcasted_iota(jnp.int32, logits.shape, 1)
        logits = jnp.where(lane < n_output, logits, jnp.float32(-1e30))  # mask pad lanes
        m = jnp.max(logits, axis=-1, keepdims=True)
        shifted = logits - m
        lse = jnp.log(jnp.sum(jnp.exp(shifted), axis=-1, keepdims=True))
        out_ref[...] = (shifted - lse).astype(out_ref.dtype)

    return kernel


def _fused_rnn_head(x_flat, rnn_weights, w_lin, b_lin, *,
                    n_layers, T, b_pad, h_pad, o_pad, n_output):
    t_tile = _pick_t_tile(T)
    num_tiles = T // t_tile
    rows = t_tile * b_pad
    f_pad = x_flat.shape[1]

    kernel = _make_fused_kernel(n_layers, t_tile, b_pad, h_pad, o_pad, n_output)

    in_specs = [pl.BlockSpec((rows, f_pad), lambda i: (i, 0))]
    for w in rnn_weights:
        in_specs.append(pl.BlockSpec(w.shape, lambda i: (0, 0)))   # resident weights
    in_specs.append(pl.BlockSpec(w_lin.shape, lambda i: (0, 0)))
    in_specs.append(pl.BlockSpec(b_lin.shape, lambda i: (0, 0)))

    return pl.pallas_call(
        kernel,
        out_shape=jax.ShapeDtypeStruct((T * b_pad, o_pad), jnp.float32),
        grid=(num_tiles,),
        in_specs=in_specs,
        out_specs=pl.BlockSpec((rows, o_pad), lambda i: (i, 0)),
        scratch_shapes=[
            pltpu.VMEM((rows, h_pad), jnp.float32),              # per-tile hidden seq
            pltpu.VMEM((n_layers, b_pad, h_pad), jnp.float32),   # carried h per layer
        ],
        compiler_params=pltpu.CompilerParams(
            dimension_semantics=("arbitrary",)),                 # time is sequential
    )(x_flat, *rnn_weights, w_lin, b_lin)


# ---------------------------------------------------------------------------
# Parameter construction (deterministic, mirrors module shapes; unpadded).
# ---------------------------------------------------------------------------
def init_params(key, n_features, n_output, n_layers, n_hidden=N_HIDDEN):
    params = {"rnn": []}
    scale = 1.0 / float(jnp.sqrt(jnp.float32(n_hidden)))
    for l in range(n_layers):
        in_dim = n_features if l == 0 else n_hidden
        key, k1, k2 = jax.random.split(key, 3)
        # stored pre-transposed: w_ih_t = W_ih^T (in_dim, H), w_hh_t = W_hh^T (H, H)
        w_ih_t = jax.random.uniform(k1, (in_dim, n_hidden), jnp.float32, -scale, scale)
        w_hh_t = jax.random.uniform(k2, (n_hidden, n_hidden), jnp.float32, -scale, scale)
        params["rnn"].append((w_ih_t, w_hh_t))
    key, k3, k4 = jax.random.split(key, 3)
    params["w_lin_t"] = jax.random.uniform(k3, (n_hidden, n_output), jnp.float32, -scale, scale)
    params["b_lin"] = jax.random.uniform(k4, (1, n_output), jnp.float32, -scale, scale)
    return params


# ---------------------------------------------------------------------------
# Full forward pass: layout/padding plumbing in JAX, everything hot in Pallas.
# ---------------------------------------------------------------------------
@functools.partial(jax.jit, static_argnames=("n_layers",))
def rnn_model_forward(x, params, n_layers):
    # x: (B, T, F), batch_first like the PyTorch module.
    B, T, F = x.shape
    H = params["rnn"][0][1].shape[0]
    O = params["w_lin_t"].shape[1]

    B_pad = _round_up(B, _SUBLANES)
    F_pad = _round_up(F, _LANES)
    H_pad = _round_up(H, _LANES)
    O_pad = _round_up(O, _LANES)

    # time-major, zero-pad batch (sublanes) and features (lanes), flatten (T, B) rows.
    x_tm = jnp.transpose(x, (1, 0, 2)).astype(jnp.float32)          # (T, B, F)
    x_tm = jnp.pad(x_tm, ((0, 0), (0, B_pad - B), (0, F_pad - F)))
    x_flat = x_tm.reshape(T * B_pad, F_pad)

    # zero-pad weights (numerically inert: relu(0)=0, zero rows/cols contribute nothing).
    padded_weights = []
    for l in range(n_layers):
        w_ih_t, w_hh_t = params["rnn"][l]
        in_dim = w_ih_t.shape[0]
        in_pad = F_pad if l == 0 else H_pad
        padded_weights.append(jnp.pad(w_ih_t, ((0, in_pad - in_dim), (0, H_pad - H))))
        padded_weights.append(jnp.pad(w_hh_t, ((0, H_pad - H), (0, H_pad - H))))
    w_lin_p = jnp.pad(params["w_lin_t"], ((0, H_pad - H), (0, O_pad - O)))
    b_lin_p = jnp.pad(params["b_lin"], ((0, 0), (0, O_pad - O)))

    # TODO(synk): optionally cast matmul operands to bf16 (f32 accumulate) for the
    # v6e/v7x MXU rate, and split a padded batch axis across v7x's 2 TensorCores.
    out_flat = _fused_rnn_head(
        x_flat, padded_weights, w_lin_p, b_lin_p,
        n_layers=n_layers, T=T, b_pad=B_pad, h_pad=H_pad, o_pad=O_pad, n_output=O)

    out = out_flat.reshape(T, B_pad, O_pad)[:, :B, :O]               # strip padding
    return jnp.transpose(out, (1, 0, 2))                             # back to (B, T, O)


# ---------------------------------------------------------------------------
# Pure-JAX reference (for correctness check only).
# ---------------------------------------------------------------------------
def _reference_forward(x, params, n_layers):
    h_seq = jnp.transpose(x, (1, 0, 2)).astype(jnp.float32)          # (T, B, F)
    B = x.shape[0]
    for l in range(n_layers):
        w_ih_t, w_hh_t = params["rnn"][l]

        def step(h, x_t, _wi=w_ih_t, _wh=w_hh_t):
            h = jax.nn.relu(x_t @ _wi + h @ _wh)
            return h, h

        h0 = jnp.zeros((B, w_hh_t.shape[0]), jnp.float32)
        _, h_seq = lax.scan(step, h0, h_seq)
    logits = h_seq @ params["w_lin_t"] + params["b_lin"]
    out = jax.nn.log_softmax(logits, axis=-1)
    return jnp.transpose(out, (1, 0, 2))


if __name__ == "__main__":
    # Small shapes consistent with the module's forward.
    batch, seq, n_features, n_output, n_layers = 2, 8, 16, 10, 2

    key = jax.random.PRNGKey(0)
    key, kx, kp = jax.random.split(key, 3)
    x = jax.random.normal(kx, (batch, seq, n_features), jnp.float32)
    params = init_params(kp, n_features, n_output, n_layers)

    out = rnn_model_forward(x, params, n_layers)
    out = jax.block_until_ready(out)

    assert out.shape == (batch, seq, n_output), out.shape
    # log_softmax rows must sum (in prob space) to ~1
    row_sums = jnp.sum(jnp.exp(out), axis=-1)
    assert bool(jnp.all(jnp.abs(row_sums - 1.0) < 1e-4)), row_sums
    # compare against pure-JAX reference (loose tol: MXU matmul precision differences)
    ref = _reference_forward(x, params, n_layers)
    max_err = float(jnp.max(jnp.abs(out - ref)))
    assert max_err < 5e-2, max_err

    print("KERNEL_OK")
</pallas_src>

<mosaic_0001>
module attributes {stable_mosaic.version = 11 : i64} {
  func.func @kernel(%arg0: i32, %arg1: memref<64x128xf32, #tpu.memory_space<vmem>>, %arg2: memref<128x128xf32, #tpu.memory_space<vmem>>, %arg3: memref<128x128xf32, #tpu.memory_space<vmem>>, %arg4: memref<128x128xf32, #tpu.memory_space<vmem>>, %arg5: memref<128x128xf32, #tpu.memory_space<vmem>>, %arg6: memref<128x128xf32, #tpu.memory_space<vmem>>, %arg7: memref<1x128xf32, #tpu.memory_space<vmem>>, %arg8: memref<64x128xf32, #tpu.memory_space<vmem>>, %arg9: memref<64x128xf32, #tpu.memory_space<vmem>>, %arg10: memref<2x8x128xf32, #tpu.memory_space<vmem>>) attributes {dimension_semantics = [#tpu.dimension_semantics<arbitrary>], iteration_bounds = array<i64: 1>, scalar_prefetch = 0 : i64, scratch_operands = 2 : i64, tpu.core_type = #tpu.core_type<tc>, window_params = [{transform_indices = @transform_0, window_bounds = array<i64: 64, 128>}, {pipeline_mode = #tpu.pipeline_mode<synchronous>, transform_indices = @transform_1, window_bounds = array<i64: 128, 128>}, {pipeline_mode = #tpu.pipeline_mode<synchronous>, transform_indices = @transform_2, window_bounds = array<i64: 128, 128>}, {pipeline_mode = #tpu.pipeline_mode<synchronous>, transform_indices = @transform_3, window_bounds = array<i64: 128, 128>}, {pipeline_mode = #tpu.pipeline_mode<synchronous>, transform_indices = @transform_4, window_bounds = array<i64: 128, 128>}, {pipeline_mode = #tpu.pipeline_mode<synchronous>, transform_indices = @transform_5, window_bounds = array<i64: 128, 128>}, {pipeline_mode = #tpu.pipeline_mode<synchronous>, transform_indices = @transform_6, window_bounds = array<i64: 1, 128>}, {transform_indices = @transform_7, window_bounds = array<i64: 64, 128>}]} {
    %c0_i32 = arith.constant 0 : i32
    %0 = arith.cmpi eq, %arg0, %c0_i32 : i32
    %1 = arith.extui %0 : i1 to i32
    %c0_i32_0 = arith.constant 0 : i32
    %2 = arith.cmpi ne, %1, %c0_i32_0 : i32
    scf.if %2 {
      %cst_130 = arith.constant 0.000000e+00 : f32
      %205 = vector.broadcast %cst_130 : f32 to vector<2x8x128xf32>
      %c0_131 = arith.constant 0 : index
      %c0_132 = arith.constant 0 : index
      %c0_133 = arith.constant 0 : index
      %206 = vector.load %arg10[%c0_131, %c0_132, %c0_133] : memref<2x8x128xf32, #tpu.memory_space<vmem>>, vector<2x8x128xf32>
      tpu.vector_store %arg10[%c0_131, %c0_132, %c0_133], %205 {strides = array<i32>} : memref<2x8x128xf32, #tpu.memory_space<vmem>>, vector<2x8x128xf32>,
    } else {
    }
    %c0 = arith.constant 0 : index
    %c0_1 = arith.constant 0 : index
    %3 = vector.load %arg2[%c0, %c0_1] : memref<128x128xf32, #tpu.memory_space<vmem>>, vector<128x128xf32>
    %c0_2 = arith.constant 0 : index
    %c0_3 = arith.constant 0 : index
    %4 = vector.load %arg3[%c0_2, %c0_3] : memref<128x128xf32, #tpu.memory_space<vmem>>, vector<128x128xf32>
    %c0_4 = arith.constant 0 : index
    %c0_5 = arith.constant 0 : index
    %5 = vector.load %arg1[%c0_4, %c0_5] : memref<64x128xf32, #tpu.memory_space<vmem>>, vector<64x128xf32>
    %cst = arith.constant dense<0.000000e+00> : vector<64x128xf32>
    %6 = tpu.matmul %5, %3, %cst {dimension_numbers = #tpu.dot_dimension_numbers<[1], [0], [0], [1], [0, 0, 1, 1], [], []>} : vector<64x128xf32>, vector<128x128xf32>, vector<64x128xf32> -> vector<64x128xf32>
    %c0_6 = arith.constant 0 : index
    %c0_7 = arith.constant 0 : index
    %7 = vector.load %arg9[%c0_6, %c0_7] : memref<64x128xf32, #tpu.memory_space<vmem>>, vector<64x128xf32>
    tpu.vector_store %arg9[%c0_6, %c0_7], %6 {strides = array<i32>} : memref<64x128xf32, #tpu.memory_space<vmem>>, vector<64x128xf32>,
    %c0_8 = arith.constant 0 : index
    %c0_9 = arith.constant 0 : index
    %c0_10 = arith.constant 0 : index
    %8 = vector.load %arg10[%c0_8, %c0_9, %c0_10] : memref<2x8x128xf32, #tpu.memory_space<vmem>>, vector<1x8x128xf32>
    %9 = vector.shape_cast %8 : vector<1x8x128xf32> to vector<8x128xf32>
    %c0_i32_11 = arith.constant 0 : i32
    %c8_i32 = arith.constant 8 : i32
    %10 = arith.muli %c0_i32_11, %c8_i32 : i32
    %11 = tpu.assume_multiple %10, 8 : i32
    %12 = arith.index_cast %11 : i32 to index
    %c0_12 = arith.constant 0 : index
    %13 = vector.load %arg9[%12, %c0_12] : memref<64x128xf32, #tpu.memory_space<vmem>>, vector<8x128xf32>
    %cst_13 = arith.constant dense<0.000000e+00> : vector<8x128xf32>
    %14 = tpu.matmul %9, %4, %cst_13 {dimension_numbers = #tpu.dot_dimension_numbers<[1], [0], [0], [1], [0, 0, 1, 1], [], []>} : vector<8x128xf32>, vector<128x128xf32>, vector<8x128xf32> -> vector<8x128xf32>
    %15 = arith.addf %13, %14 : vector<8x128xf32>
    %cst_14 = arith.constant 0.000000e+00 : f32
    %16 = vector.broadcast %cst_14 : f32 to vector<8x128xf32>
    %17 = arith.maximumf %15, %16 : vector<8x128xf32>
    %18 = arith.index_cast %11 : i32 to index
    %c0_15 = arith.constant 0 : index
    %19 = vector.load %arg9[%18, %c0_15] : memref<64x128xf32, #tpu.memory_space<vmem>>, vector<8x128xf32>
    tpu.vector_store %arg9[%18, %c0_15], %17 {strides = array<i32>} : memref<64x128xf32, #tpu.memory_space<vmem>>, vector<8x128xf32>,
    %c1_i32 = arith.constant 1 : i32
    %c8_i32_16 = arith.constant 8 : i32
    %20 = arith.muli %c1_i32, %c8_i32_16 : i32
    %21 = tpu.assume_multiple %20, 8 : i32
    %22 = arith.index_cast %21 : i32 to index
    %c0_17 = arith.constant 0 : index
    %23 = vector.load %arg9[%22, %c0_17] : memref<64x128xf32, #tpu.memory_space<vmem>>, vector<8x128xf32>
    %cst_18 = arith.constant dense<0.000000e+00> : vector<8x128xf32>
    %24 = tpu.matmul %17, %4, %cst_18 {dimension_numbers = #tpu.dot_dimension_numbers<[1], [0], [0], [1], [0, 0, 1, 1], [], []>} : vector<8x128xf32>, vector<128x128xf32>, vector<8x128xf32> -> vector<8x128xf32>
    %25 = arith.addf %23, %24 : vector<8x128xf32>
    %cst_19 = arith.constant 0.000000e+00 : f32
    %26 = vector.broadcast %cst_19 : f32 to vector<8x128xf32>
    %27 = arith.maximumf %25, %26 : vector<8x128xf32>
    %28 = arith.index_cast %21 : i32 to index
    %c0_20 = arith.constant 0 : index
    %29 = vector.load %arg9[%28, %c0_20] : memref<64x128xf32, #tpu.memory_space<vmem>>, vector<8x128xf32>
    tpu.vector_store %arg9[%28, %c0_20], %27 {strides = array<i32>} : memref<64x128xf32, #tpu.memory_space<vmem>>, vector<8x128xf32>,
    %c2_i32 = arith.constant 2 : i32
    %c8_i32_21 = arith.constant 8 : i32
    %30 = arith.muli %c2_i32, %c8_i32_21 : i32
    %31 = tpu.assume_multiple %30, 8 : i32
    %32 = arith.index_cast %31 : i32 to index
    %c0_22 = arith.constant 0 : index
    %33 = vector.load %arg9[%32, %c0_22] : memref<64x128xf32, #tpu.memory_space<vmem>>, vector<8x128xf32>
    %cst_23 = arith.constant dense<0.000000e+00> : vector<8x128xf32>
    %34 = tpu.matmul %27, %4, %cst_23 {dimension_numbers = #tpu.dot_dimension_numbers<[1], [0], [0], [1], [0, 0, 1, 1], [], []>} : vector<8x128xf32>, vector<128x128xf32>, vector<8x128xf32> -> vector<8x128xf32>
    %35 = arith.addf %33, %34 : vector<8x128xf32>
    %cst_24 = arith.constant 0.000000e+00 : f32
    %36 = vector.broadcast %cst_24 : f32 to vector<8x128xf32>
    %37 = arith.maximumf %35, %36 : vector<8x128xf32>
    %38 = arith.index_cast %31 : i32 to index
    %c0_25 = arith.constant 0 : index
    %39 = vector.load %arg9[%38, %c0_25] : memref<64x128xf32, #tpu.memory_space<vmem>>, vector<8x128xf32>
    tpu.vector_store %arg9[%38, %c0_25], %37 {strides = array<i32>} : memref<64x128xf32, #tpu.memory_space<vmem>>, vector<8x128xf32>,
    %c3_i32 = arith.constant 3 : i32
    %c8_i32_26 = arith.constant 8 : i32
    %40 = arith.muli %c3_i32, %c8_i32_26 : i32
    %41 = tpu.assume_multiple %40, 8 : i32
    %42 = arith.index_cast %41 : i32 to index
    %c0_27 = arith.constant 0 : index
    %43 = vector.load %arg9[%42, %c0_27] : memref<64x128xf32, #tpu.memory_space<vmem>>, vector<8x128xf32>
    %cst_28 = arith.constant dense<0.000000e+00> : vector<8x128xf32>
    %44 = tpu.matmul %37, %4, %cst_28 {dimension_numbers = #tpu.dot_dimension_numbers<[1], [0], [0], [1], [0, 0, 1, 1], [], []>} : vector<8x128xf32>, vector<128x128xf32>, vector<8x128xf32> -> vector<8x128xf32>
    %45 = arith.addf %43, %44 : vector<8x128xf32>
    %cst_29 = arith.constant 0.000000e+00 : f32
    %46 = vector.broadcast %cst_29 : f32 to vector<8x128xf32>
    %47 = arith.maximumf %45, %46 : vector<8x128xf32>
    %48 = arith.index_cast %41 : i32 to index
    %c0_30 = arith.constant 0 : index
    %49 = vector.load %arg9[%48, %c0_30] : memref<64x128xf32, #tpu.memory_space<vmem>>, vector<8x128xf32>
    tpu.vector_store %arg9[%48, %c0_30], %47 {strides = array<i32>} : memref<64x128xf32, #tpu.memory_space<vmem>>, vector<8x128xf32>,
    %c4_i32 = arith.constant 4 : i32
    %c8_i32_31 = arith.constant 8 : i32
    %50 = arith.muli %c4_i32, %c8_i32_31 : i32
    %51 = tpu.assume_multiple %50, 8 : i32
    %52 = arith.index_cast %51 : i32 to index
    %c0_32 = arith.constant 0 : index
    %53 = vector.load %arg9[%52, %c0_32] : memref<64x128xf32, #tpu.memory_space<vmem>>, vector<8x128xf32>
    %cst_33 = arith.constant dense<0.000000e+00> : vector<8x128xf32>
    %54 = tpu.matmul %47, %4, %cst_33 {dimension_numbers = #tpu.dot_dimension_numbers<[1], [0], [0], [1], [0, 0, 1, 1], [], []>} : vector<8x128xf32>, vector<128x128xf32>, vector<8x128xf32> -> vector<8x128xf32>
    %55 = arith.addf %53, %54 : vector<8x128xf32>
    %cst_34 = arith.constant 0.000000e+00 : f32
    %56 = vector.broadcast %cst_34 : f32 to vector<8x128xf32>
    %57 = arith.maximumf %55, %56 : vector<8x128xf32>
    %58 = arith.index_cast %51 : i32 to index
    %c0_35 = arith.constant 0 : index
    %59 = vector.load %arg9[%58, %c0_35] : memref<64x128xf32, #tpu.memory_space<vmem>>, vector<8x128xf32>
    tpu.vector_store %arg9[%58, %c0_35], %57 {strides = array<i32>} : memref<64x128xf32, #tpu.memory_space<vmem>>, vector<8x128xf32>,
    %c5_i32 = arith.constant 5 : i32
    %c8_i32_36 = arith.constant 8 : i32
    %60 = arith.muli %c5_i32, %c8_i32_36 : i32
    %61 = tpu.assume_multiple %60, 8 : i32
    %62 = arith.index_cast %61 : i32 to index
    %c0_37 = arith.constant 0 : index
    %63 = vector.load %arg9[%62, %c0_37] : memref<64x128xf32, #tpu.memory_space<vmem>>, vector<8x128xf32>
    %cst_38 = arith.constant dense<0.000000e+00> : vector<8x128xf32>
    %64 = tpu.matmul %57, %4, %cst_38 {dimension_numbers = #tpu.dot_dimension_numbers<[1], [0], [0], [1], [0, 0, 1, 1], [], []>} : vector<8x128xf32>, vector<128x128xf32>, vector<8x128xf32> -> vector<8x128xf32>
    %65 = arith.addf %63, %64 : vector<8x128xf32>
    %cst_39 = arith.constant 0.000000e+00 : f32
    %66 = vector.broadcast %cst_39 : f32 to vector<8x128xf32>
    %67 = arith.maximumf %65, %66 : vector<8x128xf32>
    %68 = arith.index_cast %61 : i32 to index
    %c0_40 = arith.constant 0 : index
    %69 = vector.load %arg9[%68, %c0_40] : memref<64x128xf32, #tpu.memory_space<vmem>>, vector<8x128xf32>
    tpu.vector_store %arg9[%68, %c0_40], %67 {strides = array<i32>} : memref<64x128xf32, #tpu.memory_space<vmem>>, vector<8x128xf32>,
    %c6_i32 = arith.constant 6 : i32
    %c8_i32_41 = arith.constant 8 : i32
    %70 = arith.muli %c6_i32, %c8_i32_41 : i32
    %71 = tpu.assume_multiple %70, 8 : i32
    %72 = arith.index_cast %71 : i32 to index
    %c0_42 = arith.constant 0 : index
    %73 = vector.load %arg9[%72, %c0_42] : memref<64x128xf32, #tpu.memory_space<vmem>>, vector<8x128xf32>
    %cst_43 = arith.constant dense<0.000000e+00> : vector<8x128xf32>
    %74 = tpu.matmul %67, %4, %cst_43 {dimension_numbers = #tpu.dot_dimension_numbers<[1], [0], [0], [1], [0, 0, 1, 1], [], []>} : vector<8x128xf32>, vector<128x128xf32>, vector<8x128xf32> -> vector<8x128xf32>
    %75 = arith.addf %73, %74 : vector<8x128xf32>
    %cst_44 = arith.constant 0.000000e+00 : f32
    %76 = vector.broadcast %cst_44 : f32 to vector<8x128xf32>
    %77 = arith.maximumf %75, %76 : vector<8x128xf32>
    %78 = arith.index_cast %71 : i32 to index
    %c0_45 = arith.constant 0 : index
    %79 = vector.load %arg9[%78, %c0_45] : memref<64x128xf32, #tpu.memory_space<vmem>>, vector<8x128xf32>
    tpu.vector_store %arg9[%78, %c0_45], %77 {strides = array<i32>} : memref<64x128xf32, #tpu.memory_space<vmem>>, vector<8x128xf32>,
    %c7_i32 = arith.constant 7 : i32
    %c8_i32_46 = arith.constant 8 : i32
    %80 = arith.muli %c7_i32, %c8_i32_46 : i32
    %81 = tpu.assume_multiple %80, 8 : i32
    %82 = arith.index_cast %81 : i32 to index
    %c0_47 = arith.constant 0 : index
    %83 = vector.load %arg9[%82, %c0_47] : memref<64x128xf32, #tpu.memory_space<vmem>>, vector<8x128xf32>
    %cst_48 = arith.constant dense<0.000000e+00> : vector<8x128xf32>
    %84 = tpu.matmul %77, %4, %cst_48 {dimension_numbers = #tpu.dot_dimension_numbers<[1], [0], [0], [1], [0, 0, 1, 1], [], []>} : vector<8x128xf32>, vector<128x128xf32>, vector<8x128xf32> -> vector<8x128xf32>
    %85 = arith.addf %83, %84 : vector<8x128xf32>
    %cst_49 = arith.constant 0.000000e+00 : f32
    %86 = vector.broadcast %cst_49 : f32 to vector<8x128xf32>
    %87 = arith.maximumf %85, %86 : vector<8x128xf32>
    %88 = arith.index_cast %81 : i32 to index
    %c0_50 = arith.constant 0 : index
    %89 = vector.load %arg9[%88, %c0_50] : memref<64x128xf32, #tpu.memory_space<vmem>>, vector<8x128xf32>
    tpu.vector_store %arg9[%88, %c0_50], %87 {strides = array<i32>} : memref<64x128xf32, #tpu.memory_space<vmem>>, vector<8x128xf32>,
    %c8_i32_51 = arith.constant 8 : i32
    %c0_52 = arith.constant 0 : index
    %c0_53 = arith.constant 0 : index
    %c0_54 = arith.constant 0 : index
    %90 = vector.load %arg10[%c0_52, %c0_53, %c0_54] : memref<2x8x128xf32, #tpu.memory_space<vmem>>, vector<1x8x128xf32>
    %91 = vector.shape_cast %90 : vector<1x8x128xf32> to vector<8x128xf32>
    %92 = vector.shape_cast %87 : vector<8x128xf32> to vector<1x8x128xf32>
    tpu.vector_store %arg10[%c0_52, %c0_53, %c0_54], %92 {strides = array<i32>} : memref<2x8x128xf32, #tpu.memory_space<vmem>>, vector<1x8x128xf32>,
    %c0_55 = arith.constant 0 : index
    %c0_56 = arith.constant 0 : index
    %93 = vector.load %arg4[%c0_55, %c0_56] : memref<128x128xf32, #tpu.memory_space<vmem>>, vector<128x128xf32>
    %c0_57 = arith.constant 0 : index
    %c0_58 = arith.constant 0 : index
    %94 = vector.load %arg5[%c0_57, %c0_58] : memref<128x128xf32, #tpu.memory_space<vmem>>, vector<128x128xf32>
    %c0_59 = arith.constant 0 : index
    %c0_60 = arith.constant 0 : index
    %95 = vector.load %arg9[%c0_59, %c0_60] : memref<64x128xf32, #tpu.memory_space<vmem>>, vector<64x128xf32>
    %cst_61 = arith.constant dense<0.000000e+00> : vector<64x128xf32>
    %96 = tpu.matmul %95, %93, %cst_61 {dimension_numbers = #tpu.dot_dimension_numbers<[1], [0], [0], [1], [0, 0, 1, 1], [], []>} : vector<64x128xf32>, vector<128x128xf32>, vector<64x128xf32> -> vector<64x128xf32>
    %c0_62 = arith.constant 0 : index
    %c0_63 = arith.constant 0 : index
    %97 = vector.load %arg9[%c0_62, %c0_63] : memref<64x128xf32, #tpu.memory_space<vmem>>, vector<64x128xf32>
    tpu.vector_store %arg9[%c0_62, %c0_63], %96 {strides = array<i32>} : memref<64x128xf32, #tpu.memory_space<vmem>>, vector<64x128xf32>,
    %c1 = arith.constant 1 : index
    %c0_64 = arith.constant 0 : index
    %c0_65 = arith.constant 0 : index
    %98 = vector.load %arg10[%c1, %c0_64, %c0_65] : memref<2x8x128xf32, #tpu.memory_space<vmem>>, vector<1x8x128xf32>
    %99 = vector.shape_cast %98 : vector<1x8x128xf32> to vector<8x128xf32>
    %c0_i32_66 = arith.constant 0 : i32
    %c8_i32_67 = arith.constant 8 : i32
    %100 = arith.muli %c0_i32_66, %c8_i32_67 : i32
    %101 = tpu.assume_multiple %100, 8 : i32
    %102 = arith.index_cast %101 : i32 to index
    %c0_68 = arith.constant 0 : index
    %103 = vector.load %arg9[%102, %c0_68] : memref<64x128xf32, #tpu.memory_space<vmem>>, vector<8x128xf32>
    %cst_69 = arith.constant dense<0.000000e+00> : vector<8x128xf32>
    %104 = tpu.matmul %99, %94, %cst_69 {dimension_numbers = #tpu.dot_dimension_numbers<[1], [0], [0], [1], [0, 0, 1, 1], [], []>} : vector<8x128xf32>, vector<128x128xf32>, vector<8x128xf32> -> vector<8x128xf32>
    %105 = arith.addf %103, %104 : vector<8x128xf32>
    %cst_70 = arith.constant 0.000000e+00 : f32
    %106 = vector.broadcast %cst_70 : f32 to vector<8x128xf32>
    %107 = arith.maximumf %105, %106 : vector<8x128xf32>
    %108 = arith.index_cast %101 : i32 to index
    %c0_71 = arith.constant 0 : index
    %109 = vector.load %arg9[%108, %c0_71] : memref<64x128xf32, #tpu.memory_space<vmem>>, vector<8x128xf32>
    tpu.vector_store %arg9[%108, %c0_71], %107 {strides = array<i32>} : memref<64x128xf32, #tpu.memory_space<vmem>>, vector<8x128xf32>,
    %c1_i32_72 = arith.constant 1 : i32
    %c8_i32_73 = arith.constant 8 : i32
    %110 = arith.muli %c1_i32_72, %c8_i32_73 : i32
    %111 = tpu.assume_multiple %110, 8 : i32
    %112 = arith.index_cast %111 : i32 to index
    %c0_74 = arith.constant 0 : index
    %113 = vector.load %arg9[%112, %c0_74] : memref<64x128xf32, #tpu.memory_space<vmem>>, vector<8x128xf32>
    %cst_75 = arith.constant dense<0.000000e+00> : vector<8x128xf32>
    %114 = tpu.matmul %107, %94, %cst_75 {dimension_numbers = #tpu.dot_dimension_numbers<[1], [0], [0], [1], [0, 0, 1, 1], [], []>} : vector<8x128xf32>, vector<128x128xf32>, vector<8x128xf32> -> vector<8x128xf32>
    %115 = arith.addf %113, %114 : vector<8x128xf32>
    %cst_76 = arith.constant 0.000000e+00 : f32
    %116 = vector.broadcast %cst_76 : f32 to vector<8x128xf32>
    %117 = arith.maximumf %115, %116 : vector<8x128xf32>
    %118 = arith.index_cast %111 : i32 to index
    %c0_77 = arith.constant 0 : index
    %119 = vector.load %arg9[%118, %c0_77] : memref<64x128xf32, #tpu.memory_space<vmem>>, vector<8x128xf32>
    tpu.vector_store %arg9[%118, %c0_77], %117 {strides = array<i32>} : memref<64x128xf32, #tpu.memory_space<vmem>>, vector<8x128xf32>,
    %c2_i32_78 = arith.constant 2 : i32
    %c8_i32_79 = arith.constant 8 : i32
    %120 = arith.muli %c2_i32_78, %c8_i32_79 : i32
    %121 = tpu.assume_multiple %120, 8 : i32
    %122 = arith.index_cast %121 : i32 to index
    %c0_80 = arith.constant 0 : index
    %123 = vector.load %arg9[%122, %c0_80] : memref<64x128xf32, #tpu.memory_space<vmem>>, vector<8x128xf32>
    %cst_81 = arith.constant dense<0.000000e+00> : vector<8x128xf32>
    %124 = tpu.matmul %117, %94, %cst_81 {dimension_numbers = #tpu.dot_dimension_numbers<[1], [0], [0], [1], [0, 0, 1, 1], [], []>} : vector<8x128xf32>, vector<128x128xf32>, vector<8x128xf32> -> vector<8x128xf32>
    %125 = arith.addf %123, %124 : vector<8x128xf32>
    %cst_82 = arith.constant 0.000000e+00 : f32
    %126 = vector.broadcast %cst_82 : f32 to vector<8x128xf32>
    %127 = arith.maximumf %125, %126 : vector<8x128xf32>
    %128 = arith.index_cast %121 : i32 to index
    %c0_83 = arith.constant 0 : index
    %129 = vector.load %arg9[%128, %c0_83] : memref<64x128xf32, #tpu.memory_space<vmem>>, vector<8x128xf32>
    tpu.vector_store %arg9[%128, %c0_83], %127 {strides = array<i32>} : memref<64x128xf32, #tpu.memory_space<vmem>>, vector<8x128xf32>,
    %c3_i32_84 = arith.constant 3 : i32
    %c8_i32_85 = arith.constant 8 : i32
    %130 = arith.muli %c3_i32_84, %c8_i32_85 : i32
    %131 = tpu.assume_multiple %130, 8 : i32
    %132 = arith.index_cast %131 : i32 to index
    %c0_86 = arith.constant 0 : index
    %133 = vector.load %arg9[%132, %c0_86] : memref<64x128xf32, #tpu.memory_space<vmem>>, vector<8x128xf32>
    %cst_87 = arith.constant dense<0.000000e+00> : vector<8x128xf32>
    %134 = tpu.matmul %127, %94, %cst_87 {dimension_numbers = #tpu.dot_dimension_numbers<[1], [0], [0], [1], [0, 0, 1, 1], [], []>} : vector<8x128xf32>, vector<128x128xf32>, vector<8x128xf32> -> vector<8x128xf32>
    %135 = arith.addf %133, %134 : vector<8x128xf32>
    %cst_88 = arith.constant 0.000000e+00 : f32
    %136 = vector.broadcast %cst_88 : f32 to vector<8x128xf32>
    %137 = arith.maximumf %135, %136 : vector<8x128xf32>
    %138 = arith.index_cast %131 : i32 to index
    %c0_89 = arith.constant 0 : index
    %139 = vector.load %arg9[%138, %c0_89] : memref<64x128xf32, #tpu.memory_space<vmem>>, vector<8x128xf32>
    tpu.vector_store %arg9[%138, %c0_89], %137 {strides = array<i32>} : memref<64x128xf32, #tpu.memory_space<vmem>>, vector<8x128xf32>,
    %c4_i32_90 = arith.constant 4 : i32
    %c8_i32_91 = arith.constant 8 : i32
    %140 = arith.muli %c4_i32_90, %c8_i32_91 : i32
    %141 = tpu.assume_multiple %140, 8 : i32
    %142 = arith.index_cast %141 : i32 to index
    %c0_92 = arith.constant 0 : index
    %143 = vector.load %arg9[%142, %c0_92] : memref<64x128xf32, #tpu.memory_space<vmem>>, vector<8x128xf32>
    %cst_93 = arith.constant dense<0.000000e+00> : vector<8x128xf32>
    %144 = tpu.matmul %137, %94, %cst_93 {dimension_numbers = #tpu.dot_dimension_numbers<[1], [0], [0], [1], [0, 0, 1, 1], [], []>} : vector<8x128xf32>, vector<128x128xf32>, vector<8x128xf32> -> vector<8x128xf32>
    %145 = arith.addf %143, %144 : vector<8x128xf32>
    %cst_94 = arith.constant 0.000000e+00 : f32
    %146 = vector.broadcast %cst_94 : f32 to vector<8x128xf32>
    %147 = arith.maximumf %145, %146 : vector<8x128xf32>
    %148 = arith.index_cast %141 : i32 to index
    %c0_95 = arith.constant 0 : index
    %149 = vector.load %arg9[%148, %c0_95] : memref<64x128xf32, #tpu.memory_space<vmem>>, vector<8x128xf32>
    tpu.vector_store %arg9[%148, %c0_95], %147 {strides = array<i32>} : memref<64x128xf32, #tpu.memory_space<vmem>>, vector<8x128xf32>,
    %c5_i32_96 = arith.constant 5 : i32
    %c8_i32_97 = arith.constant 8 : i32
    %150 = arith.muli %c5_i32_96, %c8_i32_97 : i32
    %151 = tpu.assume_multiple %150, 8 : i32
    %152 = arith.index_cast %151 : i32 to index
    %c0_98 = arith.constant 0 : index
    %153 = vector.load %arg9[%152, %c0_98] : memref<64x128xf32, #tpu.memory_space<vmem>>, vector<8x128xf32>
    %cst_99 = arith.constant dense<0.000000e+00> : vector<8x128xf32>
    %154 = tpu.matmul %147, %94, %cst_99 {dimension_numbers = #tpu.dot_dimension_numbers<[1], [0], [0], [1], [0, 0, 1, 1], [], []>} : vector<8x128xf32>, vector<128x128xf32>, vector<8x128xf32> -> vector<8x128xf32>
    %155 = arith.addf %153, %154 : vector<8x128xf32>
    %cst_100 = arith.constant 0.000000e+00 : f32
    %156 = vector.broadcast %cst_100 : f32 to vector<8x128xf32>
    %157 = arith.maximumf %155, %156 : vector<8x128xf32>
    %158 = arith.index_cast %151 : i32 to index
    %c0_101 = arith.constant 0 : index
    %159 = vector.load %arg9[%158, %c0_101] : memref<64x128xf32, #tpu.memory_space<vmem>>, vector<8x128xf32>
    tpu.vector_store %arg9[%158, %c0_101], %157 {strides = array<i32>} : memref<64x128xf32, #tpu.memory_space<vmem>>, vector<8x128xf32>,
    %c6_i32_102 = arith.constant 6 : i32
    %c8_i32_103 = arith.constant 8 : i32
    %160 = arith.muli %c6_i32_102, %c8_i32_103 : i32
    %161 = tpu.assume_multiple %160, 8 : i32
    %162 = arith.index_cast %161 : i32 to index
    %c0_104 = arith.constant 0 : index
    %163 = vector.load %arg9[%162, %c0_104] : memref<64x128xf32, #tpu.memory_space<vmem>>, vector<8x128xf32>
    %cst_105 = arith.constant dense<0.000000e+00> : vector<8x128xf32>
    %164 = tpu.matmul %157, %94, %cst_105 {dimension_numbers = #tpu.dot_dimension_numbers<[1], [0], [0], [1], [0, 0, 1, 1], [], []>} : vector<8x128xf32>, vector<128x128xf32>, vector<8x128xf32> -> vector<8x128xf32>
    %165 = arith.addf %163, %164 : vector<8x128xf32>
    %cst_106 = arith.constant 0.000000e+00 : f32
    %166 = vector.broadcast %cst_106 : f32 to vector<8x128xf32>
    %167 = arith.maximumf %165, %166 : vector<8x128xf32>
    %168 = arith.index_cast %161 : i32 to index
    %c0_107 = arith.constant 0 : index
    %169 = vector.load %arg9[%168, %c0_107] : memref<64x128xf32, #tpu.memory_space<vmem>>, vector<8x128xf32>
    tpu.vector_store %arg9[%168, %c0_107], %167 {strides = array<i32>} : memref<64x128xf32, #tpu.memory_space<vmem>>, vector<8x128xf32>,
    %c7_i32_108 = arith.constant 7 : i32
    %c8_i32_109 = arith.constant 8 : i32
    %170 = arith.muli %c7_i32_108, %c8_i32_109 : i32
    %171 = tpu.assume_multiple %170, 8 : i32
    %172 = arith.index_cast %171 : i32 to index
    %c0_110 = arith.constant 0 : index
    %173 = vector.load %arg9[%172, %c0_110] : memref<64x128xf32, #tpu.memory_space<vmem>>, vector<8x128xf32>
    %cst_111 = arith.constant dense<0.000000e+00> : vector<8x128xf32>
    %174 = tpu.matmul %167, %94, %cst_111 {dimension_numbers = #tpu.dot_dimension_numbers<[1], [0], [0], [1], [0, 0, 1, 1], [], []>} : vector<8x128xf32>, vector<128x128xf32>, vector<8x128xf32> -> vector<8x128xf32>
    %175 = arith.addf %173, %174 : vector<8x128xf32>
    %cst_112 = arith.constant 0.000000e+00 : f32
    %176 = vector.broadcast %cst_112 : f32 to vector<8x128xf32>
    %177 = arith.maximumf %175, %176 : vector<8x128xf32>
    %178 = arith.index_cast %171 : i32 to index
    %c0_113 = arith.constant 0 : index
    %179 = vector.load %arg9[%178, %c0_113] : memref<64x128xf32, #tpu.memory_space<vmem>>, vector<8x128xf32>
    tpu.vector_store %arg9[%178, %c0_113], %177 {strides = array<i32>} : memref<64x128xf32, #tpu.memory_space<vmem>>, vector<8x128xf32>,
    %c8_i32_114 = arith.constant 8 : i32
    %c1_115 = arith.constant 1 : index
    %c0_116 = arith.constant 0 : index
    %c0_117 = arith.constant 0 : index
    %180 = vector.load %arg10[%c1_115, %c0_116, %c0_117] : memref<2x8x128xf32, #tpu.memory_space<vmem>>, vector<1x8x128xf32>
    %181 = vector.shape_cast %180 : vector<1x8x128xf32> to vector<8x128xf32>
    %182 = vector.shape_cast %177 : vector<8x128xf32> to vector<1x8x128xf32>
    tpu.vector_store %arg10[%c1_115, %c0_116, %c0_117], %182 {strides = array<i32>} : memref<2x8x128xf32, #tpu.memory_space<vmem>>, vector<1x8x128xf32>,
    %c0_118 = arith.constant 0 : index
    %c0_119 = arith.constant 0 : index
    %183 = vector.load %arg9[%c0_118, %c0_119] : memref<64x128xf32, #tpu.memory_space<vmem>>, vector<64x128xf32>
    %c0_120 = arith.constant 0 : index
    %c0_121 = arith.constant 0 : index
    %184 = vector.load %arg6[%c0_120, %c0_121] : memref<128x128xf32, #tpu.memory_space<vmem>>, vector<128x128xf32>
    %cst_122 = arith.constant dense<0.000000e+00> : vector<64x128xf32>
    %185 = tpu.matmul %183, %184, %cst_122 {dimension_numbers = #tpu.dot_dimension_numbers<[1], [0], [0], [1], [0, 0, 1, 1], [], []>} : vector<64x128xf32>, vector<128x128xf32>, vector<64x128xf32> -> vector<64x128xf32>
    %c0_123 = arith.constant 0 : index
    %c0_124 = arith.constant 0 : index
    %186 = vector.load %arg7[%c0_123, %c0_124] : memref<1x128xf32, #tpu.memory_space<vmem>>, vector<1x128xf32>
    %187 = vector.broadcast %186 : vector<1x128xf32> to vector<64x128xf32>
    %188 = arith.addf %185, %187 : vector<64x128xf32>
    %189 = tpu.iota {dimensions = array<i32: 1>} : vector<64x128xi32>
    %c10_i32 = arith.constant 10 : i32
    %190 = vector.broadcast %c10_i32 : i32 to vector<64x128xi32>
    %191 = arith.cmpi slt, %189, %190 : vector<64x128xi32>
    %cst_125 = arith.constant -1.000000e+30 : f32
    %192 = vector.broadcast %cst_125 : f32 to vector<64x128xf32>
    %193 = arith.select %191, %188, %192 : vector<64x128xi1>, vector<64x128xf32>
    %cst_126 = arith.constant dense<0xFF800000> : vector<64xf32>
    %194 = vector.multi_reduction <maximumf>, %193, %cst_126 [1] : vector<64x128xf32> to vector<64xf32>
    %195 = vector.shape_cast %194 : vector<64xf32> to vector<64x1xf32>
    %196 = vector.broadcast %195 : vector<64x1xf32> to vector<64x128xf32>
    %197 = arith.subf %193, %196 : vector<64x128xf32>
    %198 = math.exp %197 : vector<64x128xf32>
    %cst_127 = arith.constant dense<0.000000e+00> : vector<64xf32>
    %199 = vector.multi_reduction <add>, %198, %cst_127 [1] : vector<64x128xf32> to vector<64xf32>
    %200 = vector.shape_cast %199 : vector<64xf32> to vector<64x1xf32>
    %201 = math.log %200 : vector<64x1xf32>
    %202 = vector.broadcast %201 : vector<64x1xf32> to vector<64x128xf32>
    %203 = arith.subf %197, %202 : vector<64x128xf32>
    %c0_128 = arith.constant 0 : index
    %c0_129 = arith.constant 0 : index
    %204 = vector.load %arg8[%c0_128, %c0_129] : memref<64x128xf32, #tpu.memory_space<vmem>>, vector<64x128xf32>
    tpu.vector_store %arg8[%c0_128, %c0_129], %203 {strides = array<i32>} : memref<64x128xf32, #tpu.memory_space<vmem>>, vector<64x128xf32>,
    return
  }
  func.func @transform_0(%arg0: i32) -> (i32, i32) {
    %c0_i32 = arith.constant 0 : i32
    %c0_i32_0 = arith.constant 0 : i32
    return %arg0, %c0_i32 : i32, i32
  }
  func.func @transform_1(%arg0: i32) -> (i32, i32) {
    %c0_i32 = arith.constant 0 : i32
    %c0_i32_0 = arith.constant 0 : i32
    %c0_i32_1 = arith.constant 0 : i32
    return %c0_i32, %c0_i32_0 : i32, i32
  }
  func.func @transform_2(%arg0: i32) -> (i32, i32) {
    %c0_i32 = arith.constant 0 : i32
    %c0_i32_0 = arith.constant 0 : i32
    %c0_i32_1 = arith.constant 0 : i32
    return %c0_i32, %c0_i32_0 : i32, i32
  }
  func.func @transform_3(%arg0: i32) -> (i32, i32) {
    %c0_i32 = arith.constant 0 : i32
    %c0_i32_0 = arith.constant 0 : i32
    %c0_i32_1 = arith.constant 0 : i32
    return %c0_i32, %c0_i32_0 : i32, i32
  }
  func.func @transform_4(%arg0: i32) -> (i32, i32) {
    %c0_i32 = arith.constant 0 : i32
    %c0_i32_0 = arith.constant 0 : i32
    %c0_i32_1 = arith.constant 0 : i32
    return %c0_i32, %c0_i32_0 : i32, i32
  }
  func.func @transform_5(%arg0: i32) -> (i32, i32) {
    %c0_i32 = arith.constant 0 : i32
    %c0_i32_0 = arith.constant 0 : i32
    %c0_i32_1 = arith.constant 0 : i32
    return %c0_i32, %c0_i32_0 : i32, i32
  }
  func.func @transform_6(%arg0: i32) -> (i32, i32) {
    %c0_i32 = arith.constant 0 : i32
    %c0_i32_0 = arith.constant 0 : i32
    %c0_i32_1 = arith.constant 0 : i32
    return %c0_i32, %c0_i32_0 : i32, i32
  }
  func.func @transform_7(%arg0: i32) -> (i32, i32) {
    %c0_i32 = arith.constant 0 : i32
    %c0_i32_0 = arith.constant 0 : i32
    return %arg0, %c0_i32 : i32, i32
  }
}

</mosaic_0001>

<llo_original>
// kernel: rnn_model_forward.1
$region0: #{rnn_model_forward.1}
  #allocation0 [shape = 'u32[]', space=smem, size = 0x4, offset = 0x4, fixed_abs, tag = 'smem constant byte address 0x4 - core index']
  #allocation1 [shape = 'u32[144,128]{1,0:T(1,128)}', space=vmem, size = 0x12000, scoped, tag = 'internal scratch']
  #allocation2 [shape = 'f32[64,128]{1,0:T(8,128)}', space=vmem, size = 0x8000, scoped, tag = 'scratch operand']
  #allocation3 [shape = 'f32[2,8,128]{2,1,0:T(8,128)}', space=vmem, size = 0x2000, scoped, tag = 'scratch operand']
  %s0 = inlined_call_operand.vmem [shape: f32[64,128], index: 0, kind: input, shape index: {}]
  %s1 = inlined_call_operand.vmem [shape: f32[128,128], index: 1, kind: input, shape index: {}]
  %s2 = inlined_call_operand.vmem [shape: f32[128,128], index: 2, kind: input, shape index: {}]
  %s3 = inlined_call_operand.vmem [shape: f32[128,128], index: 3, kind: input, shape index: {}]
  %s4 = inlined_call_operand.vmem [shape: f32[128,128], index: 4, kind: input, shape index: {}]
  %s5 = inlined_call_operand.vmem [shape: f32[128,128], index: 5, kind: input, shape index: {}]
  %s6 = inlined_call_operand.vmem [shape: f32[1,128], index: 6, kind: input, shape index: {}]
  %s7 = inlined_call_operand.vmem [shape: f32[64,128], index: 7, kind: output, shape index: {}]
  %s8 = sld [smem:[#allocation0]]
  $region42: #{rnn_model_forward.1} parent=0
    _
  %s10 = ssub.s32 1, %s8
  %s11 = scalar_select 0, %s10, %s8
  // Predicated region
  $region2: #{rnn_model_forward.1} parent=0 // pred_check
    _
  $region3: #{rnn_model_forward.1} parent=0 // pred_check_branch
    %13 = sbr.rel (0) target = $region5
  $region4: #{rnn_model_forward.1} parent=0 // pred_region
    _
  $region5: #{rnn_model_forward.1} parent=0 // pred_fallthru
    _
  // Predicated region
  $region6: #{rnn_model_forward.1} parent=0 // pred_check
    _
  $region7: #{rnn_model_forward.1} parent=0 // pred_check_branch
    %15 = sbr.rel (0) target = $region9
  $region8: #{rnn_model_forward.1} parent=0 // pred_region
    _
  $region9: #{rnn_model_forward.1} parent=0 // pred_fallthru
    _
  // Predicated region
  $region10: #{rnn_model_forward.1} parent=0 // pred_check
    _
  $region11: #{rnn_model_forward.1} parent=0 // pred_check_branch
    %17 = sbr.rel (0) target = $region13
  $region12: #{rnn_model_forward.1} parent=0 // pred_region
    _
  $region13: #{rnn_model_forward.1} parent=0 // pred_fallthru
    _
  // Predicated region
  $region14: #{rnn_model_forward.1} parent=0 // pred_check
    _
  $region15: #{rnn_model_forward.1} parent=0 // pred_check_branch
    %19 = sbr.rel (0) target = $region17
  $region16: #{rnn_model_forward.1} parent=0 // pred_region
    _
  $region17: #{rnn_model_forward.1} parent=0 // pred_fallthru
    _
  // Predicated region
  $region18: #{rnn_model_forward.1} parent=0 // pred_check
    _
  $region19: #{rnn_model_forward.1} parent=0 // pred_check_branch
    %21 = sbr.rel (0) target = $region21
  $region20: #{rnn_model_forward.1} parent=0 // pred_region
    _
  $region21: #{rnn_model_forward.1} parent=0 // pred_fallthru
    _
  // Predicated region
  $region22: #{rnn_model_forward.1} parent=0 // pred_check
    _
  $region23: #{rnn_model_forward.1} parent=0 // pred_check_branch
    %23 = sbr.rel (0) target = $region25
  $region24: #{rnn_model_forward.1} parent=0 // pred_region
    _
  $region25: #{rnn_model_forward.1} parent=0 // pred_fallthru
    _
  // Predicated region
  $region26: #{rnn_model_forward.1} parent=0 // pred_check
    _
  $region27: #{rnn_model_forward.1} parent=0 // pred_check_branch
    %25 = sbr.rel (0) target = $region29
  $region28: #{rnn_model_forward.1} parent=0 // pred_region
    _
  $region29: #{rnn_model_forward.1} parent=0 // pred_fallthru
    _
  %p26 = scmp.eq.s32.totalorder 0, 0
  // Predicated region
  $region30: #{rnn_model_forward.1} parent=0 // pred_check
    %p27 = pneg %p26
  $region31: #{rnn_model_forward.1} parent=0 // pred_check_branch
    %29 = sbr.rel (%p27) target = $region33
  $region32: #{rnn_model_forward.1} parent=0 // pred_region
    %30 = vst [vmem:[#allocation3] sm:$0xff] 0.0
    %31 = vst [vmem:[#allocation3 + $0x8] sm:$0xff] 0.0
  $region33: #{rnn_model_forward.1} parent=0 // pred_fallthru
    _
  %v32 = vld [vmem:[%s1] sm:$0xff]
  %v33 = vld [vmem:[%s1 + $0x8] sm:$0xff]
  %v34 = vld [vmem:[%s1 + $0x10] sm:$0xff]
  %v35 = vld [vmem:[%s1 + $0x18] sm:$0xff]
  %v36 = vld [vmem:[%s1 + $0x20] sm:$0xff]
  %v37 = vld [vmem:[%s1 + $0x28] sm:$0xff]
  %v38 = vld [vmem:[%s1 + $0x30] sm:$0xff]
  %v39 = vld [vmem:[%s1 + $0x38] sm:$0xff]
  %v40 = vld [vmem:[%s1 + $0x40] sm:$0xff]
  %v41 = vld [vmem:[%s1 + $0x48] sm:$0xff]
  %v42 = vld [vmem:[%s1 + $0x50] sm:$0xff]
  %v43 = vld [vmem:[%s1 + $0x58] sm:$0xff]
  %v44 = vld [vmem:[%s1 + $0x60] sm:$0xff]
  %v45 = vld [vmem:[%s1 + $0x68] sm:$0xff]
  %v46 = vld [vmem:[%s1 + $0x70] sm:$0xff]
  %v47 = vld [vmem:[%s1 + $0x78] sm:$0xff]
  %v48 = vld [vmem:[%s2] sm:$0xff]
  %v49 = vld [vmem:[%s2 + $0x8] sm:$0xff]
  %v50 = vld [vmem:[%s2 + $0x10] sm:$0xff]
  %v51 = vld [vmem:[%s2 + $0x18] sm:$0xff]
  %v52 = vld [vmem:[%s2 + $0x20] sm:$0xff]
  %v53 = vld [vmem:[%s2 + $0x28] sm:$0xff]
  %v54 = vld [vmem:[%s2 + $0x30] sm:$0xff]
  %v55 = vld [vmem:[%s2 + $0x38] sm:$0xff]
  %v56 = vld [vmem:[%s2 + $0x40] sm:$0xff]
  %v57 = vld [vmem:[%s2 + $0x48] sm:$0xff]
  %v58 = vld [vmem:[%s2 + $0x50] sm:$0xff]
  %v59 = vld [vmem:[%s2 + $0x58] sm:$0xff]
  %v60 = vld [vmem:[%s2 + $0x60] sm:$0xff]
  %v61 = vld [vmem:[%s2 + $0x68] sm:$0xff]
  %v62 = vld [vmem:[%s2 + $0x70] sm:$0xff]
  %v63 = vld [vmem:[%s2 + $0x78] sm:$0xff]
  %v64 = vld [vmem:[%s0] sm:$0xff]
  %v65 = vld [vmem:[%s0 + $0x8] sm:$0xff]
  %v66 = vld [vmem:[%s0 + $0x10] sm:$0xff]
  %v67 = vld [vmem:[%s0 + $0x18] sm:$0xff]
  %v68 = vld [vmem:[%s0 + $0x20] sm:$0xff]
  %v69 = vld [vmem:[%s0 + $0x28] sm:$0xff]
  %v70 = vld [vmem:[%s0 + $0x30] sm:$0xff]
  %v71 = vld [vmem:[%s0 + $0x38] sm:$0xff]
  %72 = vmatprep.subr.mxu0 0.0
  %73 = vmatpush1.msra.mxu0 %v32
  %74 = vmatprep.subr.mxu0 0.0
  %75 = vmatpush1.msra.mxu0 %v33
  %76 = vmatprep.subr.mxu0 0.0
  %77 = vmatpush1.msra.mxu0 %v34
  %78 = vmatprep.subr.mxu0 0.0
  %79 = vmatpush1.msra.mxu0 %v35
  %80 = vmatprep.subr.mxu0 0.0
  %81 = vmatpush1.msra.mxu0 %v36
  %82 = vmatprep.subr.mxu0 0.0
  %83 = vmatpush1.msra.mxu0 %v37
  %84 = vmatprep.subr.mxu0 0.0
  %85 = vmatpush1.msra.mxu0 %v38
  %86 = vmatprep.subr.mxu0 0.0
  %87 = vmatpush1.msra.mxu0 %v39
  %88 = vmatprep.subr.mxu0 0.0
  %89 = vmatpush1.msra.mxu0 %v40
  %90 = vmatprep.subr.mxu0 0.0
  %91 = vmatpush1.msra.mxu0 %v41
  %92 = vmatprep.subr.mxu0 0.0
  %93 = vmatpush1.msra.mxu0 %v42
  %94 = vmatprep.subr.mxu0 0.0
  %95 = vmatpush1.msra.mxu0 %v43
  %96 = vmatprep.subr.mxu0 0.0
  %97 = vmatpush1.msra.mxu0 %v44
  %98 = vmatprep.subr.mxu0 0.0
  %99 = vmatpush1.msra.mxu0 %v45
  %100 = vmatprep.subr.mxu0 0.0
  %101 = vmatpush1.msra.mxu0 %v46
  %102 = vmatprep.subr.mxu0 0.0
  %103 = vmatpush1.msra.mxu0 %v47
  %104 = vmatprep.subr.mxu0 0.0
  %105 = vmatpush1.msra.mxu0 0.0
  %106 = vmatprep.subr.mxu0 0.0
  %107 = vmatpush1.msra.mxu0 0.0
  %108 = vmatprep.subr.mxu0 0.0
  %109 = vmatpush1.msra.mxu0 0.0
  %110 = vmatprep.subr.mxu0 0.0
  %111 = vmatpush1.msra.mxu0 0.0
  %112 = vmatprep.subr.mxu0 0.0
  %113 = vmatpush1.msra.mxu0 0.0
  %114 = vmatprep.subr.mxu0 0.0
  %115 = vmatpush1.msra.mxu0 0.0
  %116 = vmatprep.subr.mxu0 0.0
  %117 = vmatpush1.msra.mxu0 0.0
  %118 = vmatprep.subr.mxu0 0.0
  %119 = vmatpush1.msra.mxu0 0.0
  %120 = vmatprep.subr.mxu0 0.0
  %121 = vmatpush1.msra.mxu0 0.0
  %122 = vmatprep.subr.mxu0 0.0
  %123 = vmatpush1.msra.mxu0 0.0
  %124 = vmatprep.subr.mxu0 0.0
  %125 = vmatpush1.msra.mxu0 0.0
  %126 = vmatprep.subr.mxu0 0.0
  %127 = vmatpush1.msra.mxu0 0.0
  %128 = vmatprep.subr.mxu0 0.0
  %129 = vmatpush1.msra.mxu0 0.0
  %130 = vmatprep.subr.mxu0 0.0
  %131 = vmatpush1.msra.mxu0 0.0
  %132 = vmatprep.subr.mxu0 0.0
  %133 = vmatpush1.msra.mxu0 0.0
  %134 = vmatprep.subr.mxu0 0.0
  %135 = vmatpush1.msra.mxu0 0.0
  %136 = vmatprep.mubr.f32.mxu0 0.0
  %137 = vmatmul.mubr.f32.gmra.mrb[0].mxu0 %v64
  %v138 = vpop.f32.mrb[0].mxu0
  %v139 = vadd.f32 0.0, %v138
  %v140 = vpop.f32.mrb[0].mxu0
  %141 = vmatprep.mubr.f32.mxu0 0.0
  %142 = vmatmul.mubr.f32.gmra.mrb[0].mxu0 %v65
  %v143 = vpop.f32.mrb[0].mxu0
  %v144 = vadd.f32 0.0, %v143
  %v145 = vpop.f32.mrb[0].mxu0
  %146 = vmatprep.mubr.f32.mxu0 0.0
  %147 = vmatmul.mubr.f32.gmra.mrb[0].mxu0 %v66
  %v148 = vpop.f32.mrb[0].mxu0
  %v149 = vadd.f32 0.0, %v148
  %v150 = vpop.f32.mrb[0].mxu0
  %151 = vmatprep.mubr.f32.mxu0 0.0
  %152 = vmatmul.mubr.f32.gmra.mrb[0].mxu0 %v67
  %v153 = vpop.f32.mrb[0].mxu0
  %v154 = vadd.f32 0.0, %v153
  %v155 = vpop.f32.mrb[0].mxu0
  %156 = vmatprep.mubr.f32.mxu0 0.0
  %157 = vmatmul.mubr.f32.gmra.mrb[0].mxu0 %v68
  %v158 = vpop.f32.mrb[0].mxu0
  %v159 = vadd.f32 0.0, %v158
  %v160 = vpop.f32.mrb[0].mxu0
  %161 = vmatprep.mubr.f32.mxu0 0.0
  %162 = vmatmul.mubr.f32.gmra.mrb[0].mxu0 %v69
  %v163 = vpop.f32.mrb[0].mxu0
  %v164 = vadd.f32 0.0, %v163
  %v165 = vpop.f32.mrb[0].mxu0
  %166 = vmatprep.mubr.f32.mxu0 0.0
  %167 = vmatmul.mubr.f32.gmra.mrb[0].mxu0 %v70
  %v168 = vpop.f32.mrb[0].mxu0
  %v169 = vadd.f32 0.0, %v168
  %v170 = vpop.f32.mrb[0].mxu0
  %171 = vmatprep.mubr.f32.mxu0 0.0
  %172 = vmatmul.mubr.f32.gmra.mrb[0].mxu0 %v71
  %v173 = vpop.f32.mrb[0].mxu0
  %v174 = vadd.f32 0.0, %v173
  %v175 = vpop.f32.mrb[0].mxu0
  %176 = vdwg.mxu0
  %177 = vst [vmem:[#allocation2] sm:$0xff] %v139
  %178 = vst [vmem:[#allocation2 + $0x8] sm:$0xff] %v144
  %179 = vst [vmem:[#allocation2 + $0x10] sm:$0xff] %v149
  %180 = vst [vmem:[#allocation2 + $0x18] sm:$0xff] %v154
  %181 = vst [vmem:[#allocation2 + $0x20] sm:$0xff] %v159
  %182 = vst [vmem:[#allocation2 + $0x28] sm:$0xff] %v164
  %183 = vst [vmem:[#allocation2 + $0x30] sm:$0xff] %v169
  %184 = vst [vmem:[#allocation2 + $0x38] sm:$0xff] %v174
  %v185 = vld [vmem:[#allocation3] sm:$0xff]
  %v186 = vld [vmem:[#allocation2] sm:$0xff]
  %187 = vmatprep.subr.mxu0 0.0
  %188 = vmatpush1.msra.mxu0 %v48
  %189 = vmatprep.subr.mxu0 0.0
  %190 = vmatpush1.msra.mxu0 %v49
  %191 = vmatprep.subr.mxu0 0.0
  %192 = vmatpush1.msra.mxu0 %v50
  %193 = vmatprep.subr.mxu0 0.0
  %194 = vmatpush1.msra.mxu0 %v51
  %195 = vmatprep.subr.mxu0 0.0
  %196 = vmatpush1.msra.mxu0 %v52
  %197 = vmatprep.subr.mxu0 0.0
  %198 = vmatpush1.msra.mxu0 %v53
  %199 = vmatprep.subr.mxu0 0.0
  %200 = vmatpush1.msra.mxu0 %v54
  %201 = vmatprep.subr.mxu0 0.0
  %202 = vmatpush1.msra.mxu0 %v55
  %203 = vmatprep.subr.mxu0 0.0
  %204 = vmatpush1.msra.mxu0 %v56
  %205 = vmatprep.subr.mxu0 0.0
  %206 = vmatpush1.msra.mxu0 %v57
  %207 = vmatprep.subr.mxu0 0.0
  %208 = vmatpush1.msra.mxu0 %v58
  %209 = vmatprep.subr.mxu0 0.0
  %210 = vmatpush1.msra.mxu0 %v59
  %211 = vmatprep.subr.mxu0 0.0
  %212 = vmatpush1.msra.mxu0 %v60
  %213 = vmatprep.subr.mxu0 0.0
  %214 = vmatpush1.msra.mxu0 %v61
  %215 = vmatprep.subr.mxu0 0.0
  %216 = vmatpush1.msra.mxu0 %v62
  %217 = vmatprep.subr.mxu0 0.0
  %218 = vmatpush1.msra.mxu0 %v63
  %219 = vmatprep.subr.mxu0 0.0
  %220 = vmatpush1.msra.mxu0 0.0
  %221 = vmatprep.subr.mxu0 0.0
  %222 = vmatpush1.msra.mxu0 0.0
  %223 = vmatprep.subr.mxu0 0.0
  %224 = vmatpush1.msra.mxu0 0.0
  %225 = vmatprep.subr.mxu0 0.0
  %226 = vmatpush1.msra.mxu0 0.0
  %227 = vmatprep.subr.mxu0 0.0
  %228 = vmatpush1.msra.mxu0 0.0
  %229 = vmatprep.subr.mxu0 0.0
  %230 = vmatpush1.msra.mxu0 0.0
  %231 = vmatprep.subr.mxu0 0.0
  %232 = vmatpush1.msra.mxu0 0.0
  %233 = vmatprep.subr.mxu0 0.0
  %234 = vmatpush1.msra.mxu0 0.0
  %235 = vmatprep.subr.mxu0 0.0
  %236 = vmatpush1.msra.mxu0 0.0
  %237 = vmatprep.subr.mxu0 0.0
  %238 = vmatpush1.msra.mxu0 0.0
  %239 = vmatprep.subr.mxu0 0.0
  %240 = vmatpush1.msra.mxu0 0.0
  %241 = vmatprep.subr.mxu0 0.0
  %242 = vmatpush1.msra.mxu0 0.0
  %243 = vmatprep.subr.mxu0 0.0
  %244 = vmatpush1.msra.mxu0 0.0
  %245 = vmatprep.subr.mxu0 0.0
  %246 = vmatpush1.msra.mxu0 0.0
  %247 = vmatprep.subr.mxu0 0.0
  %248 = vmatpush1.msra.mxu0 0.0
  %249 = vmatprep.subr.mxu0 0.0
  %250 = vmatpush1.msra.mxu0 0.0
  %251 = vmatprep.mubr.f32.mxu0 0.0
  %252 = vmatmul.mubr.f32.gmra.mrb[0].mxu0 %v185
  %v253 = vpop.f32.mrb[0].mxu0
  %v254 = vadd.f32 0.0, %v253
  %v255 = vpop.f32.mrb[0].mxu0
  %256 = vdwg.mxu0
  %v257 = vadd.f32 %v186, %v254
  %v258 = vmax.f32 %v257, 0.0
  %259 = vst [vmem:[#allocation2] sm:$0xff] %v258
  %s260 = scalar_lea.vmem [#allocation2], 8
  %v261 = vld [vmem:[%s260] sm:$0xff]
  %262 = vmatprep.subr.mxu0 0.0
  %263 = vmatpush1.msra.mxu0 %v48
  %264 = vmatprep.subr.mxu0 0.0
  %265 = vmatpush1.msra.mxu0 %v49
  %266 = vmatprep.subr.mxu0 0.0
  %267 = vmatpush1.msra.mxu0 %v50
  %268 = vmatprep.subr.mxu0 0.0
  %269 = vmatpush1.msra.mxu0 %v51
  %270 = vmatprep.subr.mxu0 0.0
  %271 = vmatpush1.msra.mxu0 %v52
  %272 = vmatprep.subr.mxu0 0.0
  %273 = vmatpush1.msra.mxu0 %v53
  %274 = vmatprep.subr.mxu0 0.0
  %275 = vmatpush1.msra.mxu0 %v54
  %276 = vmatprep.subr.mxu0 0.0
  %277 = vmatpush1.msra.mxu0 %v55
  %278 = vmatprep.subr.mxu0 0.0
  %279 = vmatpush1.msra.mxu0 %v56
  %280 = vmatprep.subr.mxu0 0.0
  %281 = vmatpush1.msra.mxu0 %v57
  %282 = vmatprep.subr.mxu0 0.0
  %283 = vmatpush1.msra.mxu0 %v58
  %284 = vmatprep.subr.mxu0 0.0
  %285 = vmatpush1.msra.mxu0 %v59
  %286 = vmatprep.subr.mxu0 0.0
  %287 = vmatpush1.msra.mxu0 %v60
  %288 = vmatprep.subr.mxu0 0.0
  %289 = vmatpush1.msra.mxu0 %v61
  %290 = vmatprep.subr.mxu0 0.0
  %291 = vmatpush1.msra.mxu0 %v62
  %292 = vmatprep.subr.mxu0 0.0
  %293 = vmatpush1.msra.mxu0 %v63
  %294 = vmatprep.subr.mxu0 0.0
  %295 = vmatpush1.msra.mxu0 0.0
  %296 = vmatprep.subr.mxu0 0.0
  %297 = vmatpush1.msra.mxu0 0.0
  %298 = vmatprep.subr.mxu0 0.0
  %299 = vmatpush1.msra.mxu0 0.0
  %300 = vmatprep.subr.mxu0 0.0
  %301 = vmatpush1.msra.mxu0 0.0
  %302 = vmatprep.subr.mxu0 0.0
  %303 = vmatpush1.msra.mxu0 0.0
  %304 = vmatprep.subr.mxu0 0.0
  %305 = vmatpush1.msra.mxu0 0.0
  %306 = vmatprep.subr.mxu0 0.0
  %307 = vmatpush1.msra.mxu0 0.0
  %308 = vmatprep.subr.mxu0 0.0
  %309 = vmatpush1.msra.mxu0 0.0
  %310 = vmatprep.subr.mxu0 0.0
  %311 = vmatpush1.msra.mxu0 0.0
  %312 = vmatprep.subr.mxu0 0.0
  %313 = vmatpush1.msra.mxu0 0.0
  %314 = vmatprep.subr.mxu0 0.0
  %315 = vmatpush1.msra.mxu0 0.0
  %316 = vmatprep.subr.mxu0 0.0
  %317 = vmatpush1.msra.mxu0 0.0
  %318 = vmatprep.subr.mxu0 0.0
  %319 = vmatpush1.msra.mxu0 0.0
  %320 = vmatprep.subr.mxu0 0.0
  %321 = vmatpush1.msra.mxu0 0.0
  %322 = vmatprep.subr.mxu0 0.0
  %323 = vmatpush1.msra.mxu0 0.0
  %324 = vmatprep.subr.mxu0 0.0
  %325 = vmatpush1.msra.mxu0 0.0
  %326 = vmatprep.mubr.f32.mxu0 0.0
  %327 = vmatmul.mubr.f32.gmra.mrb[0].mxu0 %v258
  %v328 = vpop.f32.mrb[0].mxu0
  %v329 = vadd.f32 0.0, %v328
  %v330 = vpop.f32.mrb[0].mxu0
  %331 = vdwg.mxu0
  %v332 = vadd.f32 %v261, %v329
  %v333 = vmax.f32 %v332, 0.0
  %334 = vst [vmem:[%s260] sm:$0xff] %v333
  %s335 = scalar_lea.vmem [#allocation2], 16
  %v336 = vld [vmem:[%s335] sm:$0xff]
  %337 = vmatprep.subr.mxu0 0.0
  %338 = vmatpush1.msra.mxu0 %v48
  %339 = vmatprep.subr.mxu0 0.0
  %340 = vmatpush1.msra.mxu0 %v49
  %341 = vmatprep.subr.mxu0 0.0
  %342 = vmatpush1.msra.mxu0 %v50
  %343 = vmatprep.subr.mxu0 0.0
  %344 = vmatpush1.msra.mxu0 %v51
  %345 = vmatprep.subr.mxu0 0.0
  %346 = vmatpush1.msra.mxu0 %v52
  %347 = vmatprep.subr.mxu0 0.0
  %348 = vmatpush1.msra.mxu0 %v53
  %349 = vmatprep.subr.mxu0 0.0
  %350 = vmatpush1.msra.mxu0 %v54
  %351 = vmatprep.subr.mxu0 0.0
  %352 = vmatpush1.msra.mxu0 %v55
  %353 = vmatprep.subr.mxu0 0.0
  %354 = vmatpush1.msra.mxu0 %v56
  %355 = vmatprep.subr.mxu0 0.0
  %356 = vmatpush1.msra.mxu0 %v57
  %357 = vmatprep.subr.mxu0 0.0
  %358 = vmatpush1.msra.mxu0 %v58
  %359 = vmatprep.subr.mxu0 0.0
  %360 = vmatpush1.msra.mxu0 %v59
  %361 = vmatprep.subr.mxu0 0.0
  %362 = vmatpush1.msra.mxu0 %v60
  %363 = vmatprep.subr.mxu0 0.0
  %364 = vmatpush1.msra.mxu0 %v61
  %365 = vmatprep.subr.mxu0 0.0
  %366 = vmatpush1.msra.mxu0 %v62
  %367 = vmatprep.subr.mxu0 0.0
  %368 = vmatpush1.msra.mxu0 %v63
  %369 = vmatprep.subr.mxu0 0.0
  %370 = vmatpush1.msra.mxu0 0.0
  %371 = vmatprep.subr.mxu0 0.0
  %372 = vmatpush1.msra.mxu0 0.0
  %373 = vmatprep.subr.mxu0 0.0
  %374 = vmatpush1.msra.mxu0 0.0
  %375 = vmatprep.subr.mxu0 0.0
  %376 = vmatpush1.msra.mxu0 0.0
  %377 = vmatprep.subr.mxu0 0.0
  %378 = vmatpush1.msra.mxu0 0.0
  %379 = vmatprep.subr.mxu0 0.0
  %380 = vmatpush1.msra.mxu0 0.0
  %381 = vmatprep.subr.mxu0 0.0
  %382 = vmatpush1.msra.mxu0 0.0
  %383 = vmatprep.subr.mxu0 0.0
  %384 = vmatpush1.msra.mxu0 0.0
  %385 = vmatprep.subr.mxu0 0.0
  %386 = vmatpush1.msra.mxu0 0.0
  %387 = vmatprep.subr.mxu0 0.0
  %388 = vmatpush1.msra.mxu0 0.0
  %389 = vmatprep.subr.mxu0 0.0
  %390 = vmatpush1.msra.mxu0 0.0
  %391 = vmatprep.subr.mxu0 0.0
  %392 = vmatpush1.msra.mxu0 0.0
  %393 = vmatprep.subr.mxu0 0.0
  %394 = vmatpush1.msra.mxu0 0.0
  %395 = vmatprep.subr.mxu0 0.0
  %396 = vmatpush1.msra.mxu0 0.0
  %397 = vmatprep.subr.mxu0 0.0
  %398 = vmatpush1.msra.mxu0 0.0
  %399 = vmatprep.subr.mxu0 0.0
  %400 = vmatpush1.msra.mxu0 0.0
  %401 = vmatprep.mubr.f32.mxu0 0.0
  %402 = vmatmul.mubr.f32.gmra.mrb[0].mxu0 %v333
  %v403 = vpop.f32.mrb[0].mxu0
  %v404 = vadd.f32 0.0, %v403
  %v405 = vpop.f32.mrb[0].mxu0
  %406 = vdwg.mxu0
  %v407 = vadd.f32 %v336, %v404
  %v408 = vmax.f32 %v407, 0.0
  %409 = vst [vmem:[%s335] sm:$0xff] %v408
  %s410 = scalar_lea.vmem [#allocation2], 24
  %v411 = vld [vmem:[%s410] sm:$0xff]
  %412 = vmatprep.subr.mxu0 0.0
  %413 = vmatpush1.msra.mxu0 %v48
  %414 = vmatprep.subr.mxu0 0.0
  %415 = vmatpush1.msra.mxu0 %v49
  %416 = vmatprep.subr.mxu0 0.0
  %417 = vmatpush1.msra.mxu0 %v50
  %418 = vmatprep.subr.mxu0 0.0
  %419 = vmatpush1.msra.mxu0 %v51
  %420 = vmatprep.subr.mxu0 0.0
  %421 = vmatpush1.msra.mxu0 %v52
  %422 = vmatprep.subr.mxu0 0.0
  %423 = vmatpush1.msra.mxu0 %v53
  %424 = vmatprep.subr.mxu0 0.0
  %425 = vmatpush1.msra.mxu0 %v54
  %426 = vmatprep.subr.mxu0 0.0
  %427 = vmatpush1.msra.mxu0 %v55
  %428 = vmatprep.subr.mxu0 0.0
  %429 = vmatpush1.msra.mxu0 %v56
  %430 = vmatprep.subr.mxu0 0.0
  %431 = vmatpush1.msra.mxu0 %v57
  %432 = vmatprep.subr.mxu0 0.0
  %433 = vmatpush1.msra.mxu0 %v58
  %434 = vmatprep.subr.mxu0 0.0
  %435 = vmatpush1.msra.mxu0 %v59
  %436 = vmatprep.subr.mxu0 0.0
  %437 = vmatpush1.msra.mxu0 %v60
  %438 = vmatprep.subr.mxu0 0.0
  %439 = vmatpush1.msra.mxu0 %v61
  %440 = vmatprep.subr.mxu0 0.0
  %441 = vmatpush1.msra.mxu0 %v62
  %442 = vmatprep.subr.mxu0 0.0
  %443 = vmatpush1.msra.mxu0 %v63
  %444 = vmatprep.subr.mxu0 0.0
  %445 = vmatpush1.msra.mxu0 0.0
  %446 = vmatprep.subr.mxu0 0.0
  %447 = vmatpush1.msra.mxu0 0.0
  %448 = vmatprep.subr.mxu0 0.0
  %449 = vmatpush1.msra.mxu0 0.0
  %450 = vmatprep.subr.mxu0 0.0
  %451 = vmatpush1.msra.mxu0 0.0
  %452 = vmatprep.subr.mxu0 0.0
  %453 = vmatpush1.msra.mxu0 0.0
  %454 = vmatprep.subr.mxu0 0.0
  %455 = vmatpush1.msra.mxu0 0.0
  %456 = vmatprep.subr.mxu0 0.0
  %457 = vmatpush1.msra.mxu0 0.0
  %458 = vmatprep.subr.mxu0 0.0
  %459 = vmatpush1.msra.mxu0 0.0
  %460 = vmatprep.subr.mxu0 0.0
  %461 = vmatpush1.msra.mxu0 0.0
  %462 = vmatprep.subr.mxu0 0.0
  %463 = vmatpush1.msra.mxu0 0.0
  %464 = vmatprep.subr.mxu0 0.0
  %465 = vmatpush1.msra.mxu0 0.0
  %466 = vmatprep.subr.mxu0 0.0
  %467 = vmatpush1.msra.mxu0 0.0
  %468 = vmatprep.subr.mxu0 0.0
  %469 = vmatpush1.msra.mxu0 0.0
  %470 = vmatprep.subr.mxu0 0.0
  %471 = vmatpush1.msra.mxu0 0.0
  %472 = vmatprep.subr.mxu0 0.0
  %473 = vmatpush1.msra.mxu0 0.0
  %474 = vmatprep.subr.mxu0 0.0
  %475 = vmatpush1.msra.mxu0 0.0
  %476 = vmatprep.mubr.f32.mxu0 0.0
  %477 = vmatmul.mubr.f32.gmra.mrb[0].mxu0 %v408
  %v478 = vpop.f32.mrb[0].mxu0
  %v479 = vadd.f32 0.0, %v478
  %v480 = vpop.f32.mrb[0].mxu0
  %481 = vdwg.mxu0
  %v482 = vadd.f32 %v411, %v479
  %v483 = vmax.f32 %v482, 0.0
  %484 = vst [vmem:[%s410] sm:$0xff] %v483
  %s485 = scalar_lea.vmem [#allocation2], 32
  %v486 = vld [vmem:[%s485] sm:$0xff]
  %487 = vmatprep.subr.mxu0 0.0
  %488 = vmatpush1.msra.mxu0 %v48
  %489 = vmatprep.subr.mxu0 0.0
  %490 = vmatpush1.msra.mxu0 %v49
  %491 = vmatprep.subr.mxu0 0.0
  %492 = vmatpush1.msra.mxu0 %v50
  %493 = vmatprep.subr.mxu0 0.0
  %494 = vmatpush1.msra.mxu0 %v51
  %495 = vmatprep.subr.mxu0 0.0
  %496 = vmatpush1.msra.mxu0 %v52
  %497 = vmatprep.subr.mxu0 0.0
  %498 = vmatpush1.msra.mxu0 %v53
  %499 = vmatprep.subr.mxu0 0.0
  %500 = vmatpush1.msra.mxu0 %v54
  %501 = vmatprep.subr.mxu0 0.0
  %502 = vmatpush1.msra.mxu0 %v55
  %503 = vmatprep.subr.mxu0 0.0
  %504 = vmatpush1.msra.mxu0 %v56
  %505 = vmatprep.subr.mxu0 0.0
  %506 = vmatpush1.msra.mxu0 %v57
  %507 = vmatprep.subr.mxu0 0.0
  %508 = vmatpush1.msra.mxu0 %v58
  %509 = vmatprep.subr.mxu0 0.0
  %510 = vmatpush1.msra.mxu0 %v59
  %511 = vmatprep.subr.mxu0 0.0
  %512 = vmatpush1.msra.mxu0 %v60
  %513 = vmatprep.subr.mxu0 0.0
  %514 = vmatpush1.msra.mxu0 %v61
  %515 = vmatprep.subr.mxu0 0.0
  %516 = vmatpush1.msra.mxu0 %v62
  %517 = vmatprep.subr.mxu0 0.0
  %518 = vmatpush1.msra.mxu0 %v63
  %519 = vmatprep.subr.mxu0 0.0
  %520 = vmatpush1.msra.mxu0 0.0
  %521 = vmatprep.subr.mxu0 0.0
  %522 = vmatpush1.msra.mxu0 0.0
  %523 = vmatprep.subr.mxu0 0.0
  %524 = vmatpush1.msra.mxu0 0.0
  %525 = vmatprep.subr.mxu0 0.0
  %526 = vmatpush1.msra.mxu0 0.0
  %527 = vmatprep.subr.mxu0 0.0
  %528 = vmatpush1.msra.mxu0 0.0
  %529 = vmatprep.subr.mxu0 0.0
  %530 = vmatpush1.msra.mxu0 0.0
  %531 = vmatprep.subr.mxu0 0.0
  %532 = vmatpush1.msra.mxu0 0.0
  %533 = vmatprep.subr.mxu0 0.0
  %534 = vmatpush1.msra.mxu0 0.0
  %535 = vmatprep.subr.mxu0 0.0
  %536 = vmatpush1.msra.mxu0 0.0
  %537 = vmatprep.subr.mxu0 0.0
  %538 = vmatpush1.msra.mxu0 0.0
  %539 = vmatprep.subr.mxu0 0.0
  %540 = vmatpush1.msra.mxu0 0.0
  %541 = vmatprep.subr.mxu0 0.0
  %542 = vmatpush1.msra.mxu0 0.0
  %543 = vmatprep.subr.mxu0 0.0
  %544 = vmatpush1.msra.mxu0 0.0
  %545 = vmatprep.subr.mxu0 0.0
  %546 = vmatpush1.msra.mxu0 0.0
  %547 = vmatprep.subr.mxu0 0.0
  %548 = vmatpush1.msra.mxu0 0.0
  %549 = vmatprep.subr.mxu0 0.0
  %550 = vmatpush1.msra.mxu0 0.0
  %551 = vmatprep.mubr.f32.mxu0 0.0
  %552 = vmatmul.mubr.f32.gmra.mrb[0].mxu0 %v483
  %v553 = vpop.f32.mrb[0].mxu0
  %v554 = vadd.f32 0.0, %v553
  %v555 = vpop.f32.mrb[0].mxu0
  %556 = vdwg.mxu0
  %v557 = vadd.f32 %v486, %v554
  %v558 = vmax.f32 %v557, 0.0
  %559 = vst [vmem:[%s485] sm:$0xff] %v558
  %s560 = scalar_lea.vmem [#allocation2], 40
  %v561 = vld [vmem:[%s560] sm:$0xff]
  %562 = vmatprep.subr.mxu0 0.0
  %563 = vmatpush1.msra.mxu0 %v48
  %564 = vmatprep.subr.mxu0 0.0
  %565 = vmatpush1.msra.mxu0 %v49
  %566 = vmatprep.subr.mxu0 0.0
  %567 = vmatpush1.msra.mxu0 %v50
  %568 = vmatprep.subr.mxu0 0.0
  %569 = vmatpush1.msra.mxu0 %v51
  %570 = vmatprep.subr.mxu0 0.0
  %571 = vmatpush1.msra.mxu0 %v52
  %572 = vmatprep.subr.mxu0 0.0
  %573 = vmatpush1.msra.mxu0 %v53
  %574 = vmatprep.subr.mxu0 0.0
  %575 = vmatpush1.msra.mxu0 %v54
  %576 = vmatprep.subr.mxu0 0.0
  %577 = vmatpush1.msra.mxu0 %v55
  %578 = vmatprep.subr.mxu0 0.0
  %579 = vmatpush1.msra.mxu0 %v56
  %580 = vmatprep.subr.mxu0 0.0
  %581 = vmatpush1.msra.mxu0 %v57
  %582 = vmatprep.subr.mxu0 0.0
  %583 = vmatpush1.msra.mxu0 %v58
  %584 = vmatprep.subr.mxu0 0.0
  %585 = vmatpush1.msra.mxu0 %v59
  %586 = vmatprep.subr.mxu0 0.0
  %587 = vmatpush1.msra.mxu0 %v60
  %588 = vmatprep.subr.mxu0 0.0
  %589 = vmatpush1.msra.mxu0 %v61
  %590 = vmatprep.subr.mxu0 0.0
  %591 = vmatpush1.msra.mxu0 %v62
  %592 = vmatprep.subr.mxu0 0.0
  %593 = vmatpush1.msra.mxu0 %v63
  %594 = vmatprep.subr.mxu0 0.0
  %595 = vmatpush1.msra.mxu0 0.0
  %596 = vmatprep.subr.mxu0 0.0
  %597 = vmatpush1.msra.mxu0 0.0
  %598 = vmatprep.subr.mxu0 0.0
  %599 = vmatpush1.msra.mxu0 0.0
  %600 = vmatprep.subr.mxu0 0.0
  %601 = vmatpush1.msra.mxu0 0.0
  %602 = vmatprep.subr.mxu0 0.0
  %603 = vmatpush1.msra.mxu0 0.0
  %604 = vmatprep.subr.mxu0 0.0
  %605 = vmatpush1.msra.mxu0 0.0
  %606 = vmatprep.subr.mxu0 0.0
  %607 = vmatpush1.msra.mxu0 0.0
  %608 = vmatprep.subr.mxu0 0.0
  %609 = vmatpush1.msra.mxu0 0.0
  %610 = vmatprep.subr.mxu0 0.0
  %611 = vmatpush1.msra.mxu0 0.0
  %612 = vmatprep.subr.mxu0 0.0
  %613 = vmatpush1.msra.mxu0 0.0
  %614 = vmatprep.subr.mxu0 0.0
  %615 = vmatpush1.msra.mxu0 0.0
  %616 = vmatprep.subr.mxu0 0.0
  %617 = vmatpush1.msra.mxu0 0.0
  %618 = vmatprep.subr.mxu0 0.0
  %619 = vmatpush1.msra.mxu0 0.0
  %620 = vmatprep.subr.mxu0 0.0
  %621 = vmatpush1.msra.mxu0 0.0
  %622 = vmatprep.subr.mxu0 0.0
  %623 = vmatpush1.msra.mxu0 0.0
  %624 = vmatprep.subr.mxu0 0.0
  %625 = vmatpush1.msra.mxu0 0.0
  %626 = vmatprep.mubr.f32.mxu0 0.0
  %627 = vmatmul.mubr.f32.gmra.mrb[0].mxu0 %v558
  %v628 = vpop.f32.mrb[0].mxu0
  %v629 = vadd.f32 0.0, %v628
  %v630 = vpop.f32.mrb[0].mxu0
  %631 = vdwg.mxu0
  %v632 = vadd.f32 %v561, %v629
  %v633 = vmax.f32 %v632, 0.0
  %634 = vst [vmem:[%s560] sm:$0xff] %v633
  %s635 = scalar_lea.vmem [#allocation2], 48
  %v636 = vld [vmem:[%s635] sm:$0xff]
  %637 = vmatprep.subr.mxu0 0.0
  %638 = vmatpush1.msra.mxu0 %v48
  %639 = vmatprep.subr.mxu0 0.0
  %640 = vmatpush1.msra.mxu0 %v49
  %641 = vmatprep.subr.mxu0 0.0
  %642 = vmatpush1.msra.mxu0 %v50
  %643 = vmatprep.subr.mxu0 0.0
  %644 = vmatpush1.msra.mxu0 %v51
  %645 = vmatprep.subr.mxu0 0.0
  %646 = vmatpush1.msra.mxu0 %v52
  %647 = vmatprep.subr.mxu0 0.0
  %648 = vmatpush1.msra.mxu0 %v53
  %649 = vmatprep.subr.mxu0 0.0
  %650 = vmatpush1.msra.mxu0 %v54
  %651 = vmatprep.subr.mxu0 0.0
  %652 = vmatpush1.msra.mxu0 %v55
  %653 = vmatprep.subr.mxu0 0.0
  %654 = vmatpush1.msra.mxu0 %v56
  %655 = vmatprep.subr.mxu0 0.0
  %656 = vmatpush1.msra.mxu0 %v57
  %657 = vmatprep.subr.mxu0 0.0
  %658 = vmatpush1.msra.mxu0 %v58
  %659 = vmatprep.subr.mxu0 0.0
  %660 = vmatpush1.msra.mxu0 %v59
  %661 = vmatprep.subr.mxu0 0.0
  %662 = vmatpush1.msra.mxu0 %v60
  %663 = vmatprep.subr.mxu0 0.0
  %664 = vmatpush1.msra.mxu0 %v61
  %665 = vmatprep.subr.mxu0 0.0
  %666 = vmatpush1.msra.mxu0 %v62
  %667 = vmatprep.subr.mxu0 0.0
  %668 = vmatpush1.msra.mxu0 %v63
  %669 = vmatprep.subr.mxu0 0.0
  %670 = vmatpush1.msra.mxu0 0.0
  %671 = vmatprep.subr.mxu0 0.0
  %672 = vmatpush1.msra.mxu0 0.0
  %673 = vmatprep.subr.mxu0 0.0
  %674 = vmatpush1.msra.mxu0 0.0
  %675 = vmatprep.subr.mxu0 0.0
  %676 = vmatpush1.msra.mxu0 0.0
  %677 = vmatprep.subr.mxu0 0.0
  %678 = vmatpush1.msra.mxu0 0.0
  %679 = vmatprep.subr.mxu0 0.0
  %680 = vmatpush1.msra.mxu0 0.0
  %681 = vmatprep.subr.mxu0 0.0
  %682 = vmatpush1.msra.mxu0 0.0
  %683 = vmatprep.subr.mxu0 0.0
  %684 = vmatpush1.msra.mxu0 0.0
  %685 = vmatprep.subr.mxu0 0.0
  %686 = vmatpush1.msra.mxu0 0.0
  %687 = vmatprep.subr.mxu0 0.0
  %688 = vmatpush1.msra.mxu0 0.0
  %689 = vmatprep.subr.mxu0 0.0
  %690 = vmatpush1.msra.mxu0 0.0
  %691 = vmatprep.subr.mxu0 0.0
  %692 = vmatpush1.msra.mxu0 0.0
  %693 = vmatprep.subr.mxu0 0.0
  %694 = vmatpush1.msra.mxu0 0.0
  %695 = vmatprep.subr.mxu0 0.0
  %696 = vmatpush1.msra.mxu0 0.0
  %697 = vmatprep.subr.mxu0 0.0
  %698 = vmatpush1.msra.mxu0 0.0
  %699 = vmatprep.subr.mxu0 0.0
  %700 = vmatpush1.msra.mxu0 0.0
  %701 = vmatprep.mubr.f32.mxu0 0.0
  %702 = vmatmul.mubr.f32.gmra.mrb[0].mxu0 %v633
  %v703 = vpop.f32.mrb[0].mxu0
  %v704 = vadd.f32 0.0, %v703
  %v705 = vpop.f32.mrb[0].mxu0
  %706 = vdwg.mxu0
  %v707 = vadd.f32 %v636, %v704
  %v708 = vmax.f32 %v707, 0.0
  %709 = vst [vmem:[%s635] sm:$0xff] %v708
  %s710 = scalar_lea.vmem [#allocation2], 56
  %v711 = vld [vmem:[%s710] sm:$0xff]
  %712 = vmatprep.subr.mxu0 0.0
  %713 = vmatpush1.msra.mxu0 %v48
  %714 = vmatprep.subr.mxu0 0.0
  %715 = vmatpush1.msra.mxu0 %v49
  %716 = vmatprep.subr.mxu0 0.0
  %717 = vmatpush1.msra.mxu0 %v50
  %718 = vmatprep.subr.mxu0 0.0
  %719 = vmatpush1.msra.mxu0 %v51
  %720 = vmatprep.subr.mxu0 0.0
  %721 = vmatpush1.msra.mxu0 %v52
  %722 = vmatprep.subr.mxu0 0.0
  %723 = vmatpush1.msra.mxu0 %v53
  %724 = vmatprep.subr.mxu0 0.0
  %725 = vmatpush1.msra.mxu0 %v54
  %726 = vmatprep.subr.mxu0 0.0
  %727 = vmatpush1.msra.mxu0 %v55
  %728 = vmatprep.subr.mxu0 0.0
  %729 = vmatpush1.msra.mxu0 %v56
  %730 = vmatprep.subr.mxu0 0.0
  %731 = vmatpush1.msra.mxu0 %v57
  %732 = vmatprep.subr.mxu0 0.0
  %733 = vmatpush1.msra.mxu0 %v58
  %734 = vmatprep.subr.mxu0 0.0
  %735 = vmatpush1.msra.mxu0 %v59
  %736 = vmatprep.subr.mxu0 0.0
  %737 = vmatpush1.msra.mxu0 %v60
  %738 = vmatprep.subr.mxu0 0.0
  %739 = vmatpush1.msra.mxu0 %v61
  %740 = vmatprep.subr.mxu0 0.0
  %741 = vmatpush1.msra.mxu0 %v62
  %742 = vmatprep.subr.mxu0 0.0
  %743 = vmatpush1.msra.mxu0 %v63
  %744 = vmatprep.subr.mxu0 0.0
  %745 = vmatpush1.msra.mxu0 0.0
  %746 = vmatprep.subr.mxu0 0.0
  %747 = vmatpush1.msra.mxu0 0.0
  %748 = vmatprep.subr.mxu0 0.0
  %749 = vmatpush1.msra.mxu0 0.0
  %750 = vmatprep.subr.mxu0 0.0
  %751 = vmatpush1.msra.mxu0 0.0
  %752 = vmatprep.subr.mxu0 0.0
  %753 = vmatpush1.msra.mxu0 0.0
  %754 = vmatprep.subr.mxu0 0.0
  %755 = vmatpush1.msra.mxu0 0.0
  %756 = vmatprep.subr.mxu0 0.0
  %757 = vmatpush1.msra.mxu0 0.0
  %758 = vmatprep.subr.mxu0 0.0
  %759 = vmatpush1.msra.mxu0 0.0
  %760 = vmatprep.subr.mxu0 0.0
  %761 = vmatpush1.msra.mxu0 0.0
  %762 = vmatprep.subr.mxu0 0.0
  %763 = vmatpush1.msra.mxu0 0.0
  %764 = vmatprep.subr.mxu0 0.0
  %765 = vmatpush1.msra.mxu0 0.0
  %766 = vmatprep.subr.mxu0 0.0
  %767 = vmatpush1.msra.mxu0 0.0
  %768 = vmatprep.subr.mxu0 0.0
  %769 = vmatpush1.msra.mxu0 0.0
  %770 = vmatprep.subr.mxu0 0.0
  %771 = vmatpush1.msra.mxu0 0.0
  %772 = vmatprep.subr.mxu0 0.0
  %773 = vmatpush1.msra.mxu0 0.0
  %774 = vmatprep.subr.mxu0 0.0
  %775 = vmatpush1.msra.mxu0 0.0
  %776 = vmatprep.mubr.f32.mxu0 0.0
  %777 = vmatmul.mubr.f32.gmra.mrb[0].mxu0 %v708
  %v778 = vpop.f32.mrb[0].mxu0
  %v779 = vadd.f32 0.0, %v778
  %v780 = vpop.f32.mrb[0].mxu0
  %781 = vdwg.mxu0
  %v782 = vadd.f32 %v711, %v779
  %v783 = vmax.f32 %v782, 0.0
  %784 = vst [vmem:[%s710] sm:$0xff] %v783
  %785 = vst [vmem:[#allocation3] sm:$0xff] %v783
  %v786 = vld [vmem:[%s3] sm:$0xff]
  %v787 = vld [vmem:[%s3 + $0x8] sm:$0xff]
  %v788 = vld [vmem:[%s3 + $0x10] sm:$0xff]
  %v789 = vld [vmem:[%s3 + $0x18] sm:$0xff]
  %v790 = vld [vmem:[%s3 + $0x20] sm:$0xff]
  %v791 = vld [vmem:[%s3 + $0x28] sm:$0xff]
  %v792 = vld [vmem:[%s3 + $0x30] sm:$0xff]
  %v793 = vld [vmem:[%s3 + $0x38] sm:$0xff]
  %v794 = vld [vmem:[%s3 + $0x40] sm:$0xff]
  %v795 = vld [vmem:[%s3 + $0x48] sm:$0xff]
  %v796 = vld [vmem:[%s3 + $0x50] sm:$0xff]
  %v797 = vld [vmem:[%s3 + $0x58] sm:$0xff]
  %v798 = vld [vmem:[%s3 + $0x60] sm:$0xff]
  %v799 = vld [vmem:[%s3 + $0x68] sm:$0xff]
  %v800 = vld [vmem:[%s3 + $0x70] sm:$0xff]
  %v801 = vld [vmem:[%s3 + $0x78] sm:$0xff]
  %v802 = vld [vmem:[%s4] sm:$0xff]
  %v803 = vld [vmem:[%s4 + $0x8] sm:$0xff]
  %v804 = vld [vmem:[%s4 + $0x10] sm:$0xff]
  %v805 = vld [vmem:[%s4 + $0x18] sm:$0xff]
  %v806 = vld [vmem:[%s4 + $0x20] sm:$0xff]
  %v807 = vld [vmem:[%s4 + $0x28] sm:$0xff]
  %v808 = vld [vmem:[%s4 + $0x30] sm:$0xff]
  %v809 = vld [vmem:[%s4 + $0x38] sm:$0xff]
  %v810 = vld [vmem:[%s4 + $0x40] sm:$0xff]
  %v811 = vld [vmem:[%s4 + $0x48] sm:$0xff]
  %v812 = vld [vmem:[%s4 + $0x50] sm:$0xff]
  %v813 = vld [vmem:[%s4 + $0x58] sm:$0xff]
  %v814 = vld [vmem:[%s4 + $0x60] sm:$0xff]
  %v815 = vld [vmem:[%s4 + $0x68] sm:$0xff]
  %v816 = vld [vmem:[%s4 + $0x70] sm:$0xff]
  %v817 = vld [vmem:[%s4 + $0x78] sm:$0xff]
  %v818 = vld [vmem:[#allocation2] sm:$0xff]
  %v819 = vld [vmem:[#allocation2 + $0x8] sm:$0xff]
  %v820 = vld [vmem:[#allocation2 + $0x10] sm:$0xff]
  %v821 = vld [vmem:[#allocation2 + $0x18] sm:$0xff]
  %v822 = vld [vmem:[#allocation2 + $0x20] sm:$0xff]
  %v823 = vld [vmem:[#allocation2 + $0x28] sm:$0xff]
  %v824 = vld [vmem:[#allocation2 + $0x30] sm:$0xff]
  %v825 = vld [vmem:[#allocation2 + $0x38] sm:$0xff]
  %826 = vmatprep.subr.mxu0 0.0
  %827 = vmatpush1.msra.mxu0 %v786
  %828 = vmatprep.subr.mxu0 0.0
  %829 = vmatpush1.msra.mxu0 %v787
  %830 = vmatprep.subr.mxu0 0.0
  %831 = vmatpush1.msra.mxu0 %v788
  %832 = vmatprep.subr.mxu0 0.0
  %833 = vmatpush1.msra.mxu0 %v789
  %834 = vmatprep.subr.mxu0 0.0
  %835 = vmatpush1.msra.mxu0 %v790
  %836 = vmatprep.subr.mxu0 0.0
  %837 = vmatpush1.msra.mxu0 %v791
  %838 = vmatprep.subr.mxu0 0.0
  %839 = vmatpush1.msra.mxu0 %v792
  %840 = vmatprep.subr.mxu0 0.0
  %841 = vmatpush1.msra.mxu0 %v793
  %842 = vmatprep.subr.mxu0 0.0
  %843 = vmatpush1.msra.mxu0 %v794
  %844 = vmatprep.subr.mxu0 0.0
  %845 = vmatpush1.msra.mxu0 %v795
  %846 = vmatprep.subr.mxu0 0.0
  %847 = vmatpush1.msra.mxu0 %v796
  %848 = vmatprep.subr.mxu0 0.0
  %849 = vmatpush1.msra.mxu0 %v797
  %850 = vmatprep.subr.mxu0 0.0
  %851 = vmatpush1.msra.mxu0 %v798
  %852 = vmatprep.subr.mxu0 0.0
  %853 = vmatpush1.msra.mxu0 %v799
  %854 = vmatprep.subr.mxu0 0.0
  %855 = vmatpush1.msra.mxu0 %v800
  %856 = vmatprep.subr.mxu0 0.0
  %857 = vmatpush1.msra.mxu0 %v801
  %858 = vmatprep.subr.mxu0 0.0
  %859 = vmatpush1.msra.mxu0 0.0
  %860 = vmatprep.subr.mxu0 0.0
  %861 = vmatpush1.msra.mxu0 0.0
  %862 = vmatprep.subr.mxu0 0.0
  %863 = vmatpush1.msra.mxu0 0.0
  %864 = vmatprep.subr.mxu0 0.0
  %865 = vmatpush1.msra.mxu0 0.0
  %866 = vmatprep.subr.mxu0 0.0
  %867 = vmatpush1.msra.mxu0 0.0
  %868 = vmatprep.subr.mxu0 0.0
  %869 = vmatpush1.msra.mxu0 0.0
  %870 = vmatprep.subr.mxu0 0.0
  %871 = vmatpush1.msra.mxu0 0.0
  %872 = vmatprep.subr.mxu0 0.0
  %873 = vmatpush1.msra.mxu0 0.0
  %874 = vmatprep.subr.mxu0 0.0
  %875 = vmatpush1.msra.mxu0 0.0
  %876 = vmatprep.subr.mxu0 0.0
  %877 = vmatpush1.msra.mxu0 0.0
  %878 = vmatprep.subr.mxu0 0.0
  %879 = vmatpush1.msra.mxu0 0.0
  %880 = vmatprep.subr.mxu0 0.0
  %881 = vmatpush1.msra.mxu0 0.0
  %882 = vmatprep.subr.mxu0 0.0
  %883 = vmatpush1.msra.mxu0 0.0
  %884 = vmatprep.subr.mxu0 0.0
  %885 = vmatpush1.msra.mxu0 0.0
  %886 = vmatprep.subr.mxu0 0.0
  %887 = vmatpush1.msra.mxu0 0.0
  %888 = vmatprep.subr.mxu0 0.0
  %889 = vmatpush1.msra.mxu0 0.0
  %890 = vmatprep.mubr.f32.mxu0 0.0
  %891 = vmatmul.mubr.f32.gmra.mrb[0].mxu0 %v818
  %v892 = vpop.f32.mrb[0].mxu0
  %v893 = vadd.f32 0.0, %v892
  %v894 = vpop.f32.mrb[0].mxu0
  %895 = vmatprep.mubr.f32.mxu0 0.0
  %896 = vmatmul.mubr.f32.gmra.mrb[0].mxu0 %v819
  %v897 = vpop.f32.mrb[0].mxu0
  %v898 = vadd.f32 0.0, %v897
  %v899 = vpop.f32.mrb[0].mxu0
  %900 = vmatprep.mubr.f32.mxu0 0.0
  %901 = vmatmul.mubr.f32.gmra.mrb[0].mxu0 %v820
  %v902 = vpop.f32.mrb[0].mxu0
  %v903 = vadd.f32 0.0, %v902
  %v904 = vpop.f32.mrb[0].mxu0
  %905 = vmatprep.mubr.f32.mxu0 0.0
  %906 = vmatmul.mubr.f32.gmra.mrb[0].mxu0 %v821
  %v907 = vpop.f32.mrb[0].mxu0
  %v908 = vadd.f32 0.0, %v907
  %v909 = vpop.f32.mrb[0].mxu0
  %910 = vmatprep.mubr.f32.mxu0 0.0
  %911 = vmatmul.mubr.f32.gmra.mrb[0].mxu0 %v822
  %v912 = vpop.f32.mrb[0].mxu0
  %v913 = vadd.f32 0.0, %v912
  %v914 = vpop.f32.mrb[0].mxu0
  %915 = vmatprep.mubr.f32.mxu0 0.0
  %916 = vmatmul.mubr.f32.gmra.mrb[0].mxu0 %v823
  %v917 = vpop.f32.mrb[0].mxu0
  %v918 = vadd.f32 0.0, %v917
  %v919 = vpop.f32.mrb[0].mxu0
  %920 = vmatprep.mubr.f32.mxu0 0.0
  %921 = vmatmul.mubr.f32.gmra.mrb[0].mxu0 %v824
  %v922 = vpop.f32.mrb[0].mxu0
  %v923 = vadd.f32 0.0, %v922
  %v924 = vpop.f32.mrb[0].mxu0
  %925 = vmatprep.mubr.f32.mxu0 0.0
  %926 = vmatmul.mubr.f32.gmra.mrb[0].mxu0 %v825
  %v927 = vpop.f32.mrb[0].mxu0
  %v928 = vadd.f32 0.0, %v927
  %v929 = vpop.f32.mrb[0].mxu0
  %930 = vdwg.mxu0
  %931 = vst [vmem:[#allocation2] sm:$0xff] %v893
  %932 = vst [vmem:[#allocation2 + $0x8] sm:$0xff] %v898
  %933 = vst [vmem:[#allocation2 + $0x10] sm:$0xff] %v903
  %934 = vst [vmem:[#allocation2 + $0x18] sm:$0xff] %v908
  %935 = vst [vmem:[#allocation2 + $0x20] sm:$0xff] %v913
  %936 = vst [vmem:[#allocation2 + $0x28] sm:$0xff] %v918
  %937 = vst [vmem:[#allocation2 + $0x30] sm:$0xff] %v923
  %938 = vst [vmem:[#allocation2 + $0x38] sm:$0xff] %v928
  %s939 = scalar_lea.vmem [#allocation3], 8
  %v940 = vld [vmem:[%s939] sm:$0xff]
  %v941 = vld [vmem:[#allocation2] sm:$0xff]
  %942 = vmatprep.subr.mxu0 0.0
  %943 = vmatpush1.msra.mxu0 %v802
  %944 = vmatprep.subr.mxu0 0.0
  %945 = vmatpush1.msra.mxu0 %v803
  %946 = vmatprep.subr.mxu0 0.0
  %947 = vmatpush1.msra.mxu0 %v804
  %948 = vmatprep.subr.mxu0 0.0
  %949 = vmatpush1.msra.mxu0 %v805
  %950 = vmatprep.subr.mxu0 0.0
  %951 = vmatpush1.msra.mxu0 %v806
  %952 = vmatprep.subr.mxu0 0.0
  %953 = vmatpush1.msra.mxu0 %v807
  %954 = vmatprep.subr.mxu0 0.0
  %955 = vmatpush1.msra.mxu0 %v808
  %956 = vmatprep.subr.mxu0 0.0
  %957 = vmatpush1.msra.mxu0 %v809
  %958 = vmatprep.subr.mxu0 0.0
  %959 = vmatpush1.msra.mxu0 %v810
  %960 = vmatprep.subr.mxu0 0.0
  %961 = vmatpush1.msra.mxu0 %v811
  %962 = vmatprep.subr.mxu0 0.0
  %963 = vmatpush1.msra.mxu0 %v812
  %964 = vmatprep.subr.mxu0 0.0
  %965 = vmatpush1.msra.mxu0 %v813
  %966 = vmatprep.subr.mxu0 0.0
  %967 = vmatpush1.msra.mxu0 %v814
  %968 = vmatprep.subr.mxu0 0.0
  %969 = vmatpush1.msra.mxu0 %v815
  %970 = vmatprep.subr.mxu0 0.0
  %971 = vmatpush1.msra.mxu0 %v816
  %972 = vmatprep.subr.mxu0 0.0
  %973 = vmatpush1.msra.mxu0 %v817
  %974 = vmatprep.subr.mxu0 0.0
  %975 = vmatpush1.msra.mxu0 0.0
  %976 = vmatprep.subr.mxu0 0.0
  %977 = vmatpush1.msra.mxu0 0.0
  %978 = vmatprep.subr.mxu0 0.0
  %979 = vmatpush1.msra.mxu0 0.0
  %980 = vmatprep.subr.mxu0 0.0
  %981 = vmatpush1.msra.mxu0 0.0
  %982 = vmatprep.subr.mxu0 0.0
  %983 = vmatpush1.msra.mxu0 0.0
  %984 = vmatprep.subr.mxu0 0.0
  %985 = vmatpush1.msra.mxu0 0.0
  %986 = vmatprep.subr.mxu0 0.0
  %987 = vmatpush1.msra.mxu0 0.0
  %988 = vmatprep.subr.mxu0 0.0
  %989 = vmatpush1.msra.mxu0 0.0
  %990 = vmatprep.subr.mxu0 0.0
  %991 = vmatpush1.msra.mxu0 0.0
  %992 = vmatprep.subr.mxu0 0.0
  %993 = vmatpush1.msra.mxu0 0.0
  %994 = vmatprep.subr.mxu0 0.0
  %995 = vmatpush1.msra.mxu0 0.0
  %996 = vmatprep.subr.mxu0 0.0
  %997 = vmatpush1.msra.mxu0 0.0
  %998 = vmatprep.subr.mxu0 0.0
  %999 = vmatpush1.msra.mxu0 0.0
  %1000 = vmatprep.subr.mxu0 0.0
  %1001 = vmatpush1.msra.mxu0 0.0
  %1002 = vmatprep.subr.mxu0 0.0
  %1003 = vmatpush1.msra.mxu0 0.0
  %1004 = vmatprep.subr.mxu0 0.0
  %1005 = vmatpush1.msra.mxu0 0.0
  %1006 = vmatprep.mubr.f32.mxu0 0.0
  %1007 = vmatmul.mubr.f32.gmra.mrb[0].mxu0 %v940
  %v1008 = vpop.f32.mrb[0].mxu0
  %v1009 = vadd.f32 0.0, %v1008
  %v1010 = vpop.f32.mrb[0].mxu0
  %1011 = vdwg.mxu0
  %v1012 = vadd.f32 %v941, %v1009
  %v1013 = vmax.f32 %v1012, 0.0
  %1014 = vst [vmem:[#allocation2] sm:$0xff] %v1013
  %v1015 = vld [vmem:[%s260] sm:$0xff]
  %1016 = vmatprep.subr.mxu0 0.0
  %1017 = vmatpush1.msra.mxu0 %v802
  %1018 = vmatprep.subr.mxu0 0.0
  %1019 = vmatpush1.msra.mxu0 %v803
  %1020 = vmatprep.subr.mxu0 0.0
  %1021 = vmatpush1.msra.mxu0 %v804
  %1022 = vmatprep.subr.mxu0 0.0
  %1023 = vmatpush1.msra.mxu0 %v805
  %1024 = vmatprep.subr.mxu0 0.0
  %1025 = vmatpush1.msra.mxu0 %v806
  %1026 = vmatprep.subr.mxu0 0.0
  %1027 = vmatpush1.msra.mxu0 %v807
  %1028 = vmatprep.subr.mxu0 0.0
  %1029 = vmatpush1.msra.mxu0 %v808
  %1030 = vmatprep.subr.mxu0 0.0
  %1031 = vmatpush1.msra.mxu0 %v809
  %1032 = vmatprep.subr.mxu0 0.0
  %1033 = vmatpush1.msra.mxu0 %v810
  %1034 = vmatprep.subr.mxu0 0.0
  %1035 = vmatpush1.msra.mxu0 %v811
  %1036 = vmatprep.subr.mxu0 0.0
  %1037 = vmatpush1.msra.mxu0 %v812
  %1038 = vmatprep.subr.mxu0 0.0
  %1039 = vmatpush1.msra.mxu0 %v813
  %1040 = vmatprep.subr.mxu0 0.0
  %1041 = vmatpush1.msra.mxu0 %v814
  %1042 = vmatprep.subr.mxu0 0.0
  %1043 = vmatpush1.msra.mxu0 %v815
  %1044 = vmatprep.subr.mxu0 0.0
  %1045 = vmatpush1.msra.mxu0 %v816
  %1046 = vmatprep.subr.mxu0 0.0
  %1047 = vmatpush1.msra.mxu0 %v817
  %1048 = vmatprep.subr.mxu0 0.0
  %1049 = vmatpush1.msra.mxu0 0.0
  %1050 = vmatprep.subr.mxu0 0.0
  %1051 = vmatpush1.msra.mxu0 0.0
  %1052 = vmatprep.subr.mxu0 0.0
  %1053 = vmatpush1.msra.mxu0 0.0
  %1054 = vmatprep.subr.mxu0 0.0
  %1055 = vmatpush1.msra.mxu0 0.0
  %1056 = vmatprep.subr.mxu0 0.0
  %1057 = vmatpush1.msra.mxu0 0.0
  %1058 = vmatprep.subr.mxu0 0.0
  %1059 = vmatpush1.msra.mxu0 0.0
  %1060 = vmatprep.subr.mxu0 0.0
  %1061 = vmatpush1.msra.mxu0 0.0
  %1062 = vmatprep.subr.mxu0 0.0
  %1063 = vmatpush1.msra.mxu0 0.0
  %1064 = vmatprep.subr.mxu0 0.0
  %1065 = vmatpush1.msra.mxu0 0.0
  %1066 = vmatprep.subr.mxu0 0.0
  %1067 = vmatpush1.msra.mxu0 0.0
  %1068 = vmatprep.subr.mxu0 0.0
  %1069 = vmatpush1.msra.mxu0 0.0
  %1070 = vmatprep.subr.mxu0 0.0
  %1071 = vmatpush1.msra.mxu0 0.0
  %1072 = vmatprep.subr.mxu0 0.0
  %1073 = vmatpush1.msra.mxu0 0.0
  %1074 = vmatprep.subr.mxu0 0.0
  %1075 = vmatpush1.msra.mxu0 0.0
  %1076 = vmatprep.subr.mxu0 0.0
  %1077 = vmatpush1.msra.mxu0 0.0
  %1078 = vmatprep.subr.mxu0 0.0
  %1079 = vmatpush1.msra.mxu0 0.0
  %1080 = vmatprep.mubr.f32.mxu0 0.0
  %1081 = vmatmul.mubr.f32.gmra.mrb[0].mxu0 %v1013
  %v1082 = vpop.f32.mrb[0].mxu0
  %v1083 = vadd.f32 0.0, %v1082
  %v1084 = vpop.f32.mrb[0].mxu0
  %1085 = vdwg.mxu0
  %v1086 = vadd.f32 %v1015, %v1083
  %v1087 = vmax.f32 %v1086, 0.0
  %1088 = vst [vmem:[%s260] sm:$0xff] %v1087
  %v1089 = vld [vmem:[%s335] sm:$0xff]
  %1090 = vmatprep.subr.mxu0 0.0
  %1091 = vmatpush1.msra.mxu0 %v802
  %1092 = vmatprep.subr.mxu0 0.0
  %1093 = vmatpush1.msra.mxu0 %v803
  %1094 = vmatprep.subr.mxu0 0.0
  %1095 = vmatpush1.msra.mxu0 %v804
  %1096 = vmatprep.subr.mxu0 0.0
  %1097 = vmatpush1.msra.mxu0 %v805
  %1098 = vmatprep.subr.mxu0 0.0
  %1099 = vmatpush1.msra.mxu0 %v806
  %1100 = vmatprep.subr.mxu0 0.0
  %1101 = vmatpush1.msra.mxu0 %v807
  %1102 = vmatprep.subr.mxu0 0.0
  %1103 = vmatpush1.msra.mxu0 %v808
  %1104 = vmatprep.subr.mxu0 0.0
  %1105 = vmatpush1.msra.mxu0 %v809
  %1106 = vmatprep.subr.mxu0 0.0
  %1107 = vmatpush1.msra.mxu0 %v810
  %1108 = vmatprep.subr.mxu0 0.0
  %1109 = vmatpush1.msra.mxu0 %v811
  %1110 = vmatprep.subr.mxu0 0.0
  %1111 = vmatpush1.msra.mxu0 %v812
  %1112 = vmatprep.subr.mxu0 0.0
  %1113 = vmatpush1.msra.mxu0 %v813
  %1114 = vmatprep.subr.mxu0 0.0
  %1115 = vmatpush1.msra.mxu0 %v814
  %1116 = vmatprep.subr.mxu0 0.0
  %1117 = vmatpush1.msra.mxu0 %v815
  %1118 = vmatprep.subr.mxu0 0.0
  %1119 = vmatpush1.msra.mxu0 %v816
  %1120 = vmatprep.subr.mxu0 0.0
  %1121 = vmatpush1.msra.mxu0 %v817
  %1122 = vmatprep.subr.mxu0 0.0
  %1123 = vmatpush1.msra.mxu0 0.0
  %1124 = vmatprep.subr.mxu0 0.0
  %1125 = vmatpush1.msra.mxu0 0.0
  %1126 = vmatprep.subr.mxu0 0.0
  %1127 = vmatpush1.msra.mxu0 0.0
  %1128 = vmatprep.subr.mxu0 0.0
  %1129 = vmatpush1.msra.mxu0 0.0
  %1130 = vmatprep.subr.mxu0 0.0
  %1131 = vmatpush1.msra.mxu0 0.0
  %1132 = vmatprep.subr.mxu0 0.0
  %1133 = vmatpush1.msra.mxu0 0.0
  %1134 = vmatprep.subr.mxu0 0.0
  %1135 = vmatpush1.msra.mxu0 0.0
  %1136 = vmatprep.subr.mxu0 0.0
  %1137 = vmatpush1.msra.mxu0 0.0
  %1138 = vmatprep.subr.mxu0 0.0
  %1139 = vmatpush1.msra.mxu0 0.0
  %1140 = vmatprep.subr.mxu0 0.0
  %1141 = vmatpush1.msra.mxu0 0.0
  %1142 = vmatprep.subr.mxu0 0.0
  %1143 = vmatpush1.msra.mxu0 0.0
  %1144 = vmatprep.subr.mxu0 0.0
  %1145 = vmatpush1.msra.mxu0 0.0
  %1146 = vmatprep.subr.mxu0 0.0
  %1147 = vmatpush1.msra.mxu0 0.0
  %1148 = vmatprep.subr.mxu0 0.0
  %1149 = vmatpush1.msra.mxu0 0.0
  %1150 = vmatprep.subr.mxu0 0.0
  %1151 = vmatpush1.msra.mxu0 0.0
  %1152 = vmatprep.subr.mxu0 0.0
  %1153 = vmatpush1.msra.mxu0 0.0
  %1154 = vmatprep.mubr.f32.mxu0 0.0
  %1155 = vmatmul.mubr.f32.gmra.mrb[0].mxu0 %v1087
  %v1156 = vpop.f32.mrb[0].mxu0
  %v1157 = vadd.f32 0.0, %v1156
  %v1158 = vpop.f32.mrb[0].mxu0
  %1159 = vdwg.mxu0
  %v1160 = vadd.f32 %v1089, %v1157
  %v1161 = vmax.f32 %v1160, 0.0
  %1162 = vst [vmem:[%s335] sm:$0xff] %v1161
  %v1163 = vld [vmem:[%s410] sm:$0xff]
  %1164 = vmatprep.subr.mxu0 0.0
  %1165 = vmatpush1.msra.mxu0 %v802
  %1166 = vmatprep.subr.mxu0 0.0
  %1167 = vmatpush1.msra.mxu0 %v803
  %1168 = vmatprep.subr.mxu0 0.0
  %1169 = vmatpush1.msra.mxu0 %v804
  %1170 = vmatprep.subr.mxu0 0.0
  %1171 = vmatpush1.msra.mxu0 %v805
  %1172 = vmatprep.subr.mxu0 0.0
  %1173 = vmatpush1.msra.mxu0 %v806
  %1174 = vmatprep.subr.mxu0 0.0
  %1175 = vmatpush1.msra.mxu0 %v807
  %1176 = vmatprep.subr.mxu0 0.0
  %1177 = vmatpush1.msra.mxu0 %v808
  %1178 = vmatprep.subr.mxu0 0.0
  %1179 = vmatpush1.msra.mxu0 %v809
  %1180 = vmatprep.subr.mxu0 0.0
  %1181 = vmatpush1.msra.mxu0 %v810
  %1182 = vmatprep.subr.mxu0 0.0
  %1183 = vmatpush1.msra.mxu0 %v811
  %1184 = vmatprep.subr.mxu0 0.0
  %1185 = vmatpush1.msra.mxu0 %v812
  %1186 = vmatprep.subr.mxu0 0.0
  %1187 = vmatpush1.msra.mxu0 %v813
  %1188 = vmatprep.subr.mxu0 0.0
  %1189 = vmatpush1.msra.mxu0 %v814
  %1190 = vmatprep.subr.mxu0 0.0
  %1191 = vmatpush1.msra.mxu0 %v815
  %1192 = vmatprep.subr.mxu0 0.0
  %1193 = vmatpush1.msra.mxu0 %v816
  %1194 = vmatprep.subr.mxu0 0.0
  %1195 = vmatpush1.msra.mxu0 %v817
  %1196 = vmatprep.subr.mxu0 0.0
  %1197 = vmatpush1.msra.mxu0 0.0
  %1198 = vmatprep.subr.mxu0 0.0
  %1199 = vmatpush1.msra.mxu0 0.0
  %1200 = vmatprep.subr.mxu0 0.0
  %1201 = vmatpush1.msra.mxu0 0.0
  %1202 = vmatprep.subr.mxu0 0.0
  %1203 = vmatpush1.msra.mxu0 0.0
  %1204 = vmatprep.subr.mxu0 0.0
  %1205 = vmatpush1.msra.mxu0 0.0
  %1206 = vmatprep.subr.mxu0 0.0
  %1207 = vmatpush1.msra.mxu0 0.0
  %1208 = vmatprep.subr.mxu0 0.0
  %1209 = vmatpush1.msra.mxu0 0.0
  %1210 = vmatprep.subr.mxu0 0.0
  %1211 = vmatpush1.msra.mxu0 0.0
  %1212 = vmatprep.subr.mxu0 0.0
  %1213 = vmatpush1.msra.mxu0 0.0
  %1214 = vmatprep.subr.mxu0 0.0
  %1215 = vmatpush1.msra.mxu0 0.0
  %1216 = vmatprep.subr.mxu0 0.0
  %1217 = vmatpush1.msra.mxu0 0.0
  %1218 = vmatprep.subr.mxu0 0.0
  %1219 = vmatpush1.msra.mxu0 0.0
  %1220 = vmatprep.subr.mxu0 0.0
  %1221 = vmatpush1.msra.mxu0 0.0
  %1222 = vmatprep.subr.mxu0 0.0
  %1223 = vmatpush1.msra.mxu0 0.0
  %1224 = vmatprep.subr.mxu0 0.0
  %1225 = vmatpush1.msra.mxu0 0.0
  %1226 = vmatprep.subr.mxu0 0.0
  %1227 = vmatpush1.msra.mxu0 0.0
  %1228 = vmatprep.mubr.f32.mxu0 0.0
  %1229 = vmatmul.mubr.f32.gmra.mrb[0].mxu0 %v1161
  %v1230 = vpop.f32.mrb[0].mxu0
  %v1231 = vadd.f32 0.0, %v1230
  %v1232 = vpop.f32.mrb[0].mxu0
  %1233 = vdwg.mxu0
  %v1234 = vadd.f32 %v1163, %v1231
  %v1235 = vmax.f32 %v1234, 0.0
  %1236 = vst [vmem:[%s410] sm:$0xff] %v1235
  %v1237 = vld [vmem:[%s485] sm:$0xff]
  %1238 = vmatprep.subr.mxu0 0.0
  %1239 = vmatpush1.msra.mxu0 %v802
  %1240 = vmatprep.subr.mxu0 0.0
  %1241 = vmatpush1.msra.mxu0 %v803
  %1242 = vmatprep.subr.mxu0 0.0
  %1243 = vmatpush1.msra.mxu0 %v804
  %1244 = vmatprep.subr.mxu0 0.0
  %1245 = vmatpush1.msra.mxu0 %v805
  %1246 = vmatprep.subr.mxu0 0.0
  %1247 = vmatpush1.msra.mxu0 %v806
  %1248 = vmatprep.subr.mxu0 0.0
  %1249 = vmatpush1.msra.mxu0 %v807
  %1250 = vmatprep.subr.mxu0 0.0
  %1251 = vmatpush1.msra.mxu0 %v808
  %1252 = vmatprep.subr.mxu0 0.0
  %1253 = vmatpush1.msra.mxu0 %v809
  %1254 = vmatprep.subr.mxu0 0.0
  %1255 = vmatpush1.msra.mxu0 %v810
  %1256 = vmatprep.subr.mxu0 0.0
  %1257 = vmatpush1.msra.mxu0 %v811
  %1258 = vmatprep.subr.mxu0 0.0
  %1259 = vmatpush1.msra.mxu0 %v812
  %1260 = vmatprep.subr.mxu0 0.0
  %1261 = vmatpush1.msra.mxu0 %v813
  %1262 = vmatprep.subr.mxu0 0.0
  %1263 = vmatpush1.msra.mxu0 %v814
  %1264 = vmatprep.subr.mxu0 0.0
  %1265 = vmatpush1.msra.mxu0 %v815
  %1266 = vmatprep.subr.mxu0 0.0
  %1267 = vmatpush1.msra.mxu0 %v816
  %1268 = vmatprep.subr.mxu0 0.0
  %1269 = vmatpush1.msra.mxu0 %v817
  %1270 = vmatprep.subr.mxu0 0.0
  %1271 = vmatpush1.msra.mxu0 0.0
  %1272 = vmatprep.subr.mxu0 0.0
  %1273 = vmatpush1.msra.mxu0 0.0
  %1274 = vmatprep.subr.mxu0 0.0
  %1275 = vmatpush1.msra.mxu0 0.0
  %1276 = vmatprep.subr.mxu0 0.0
  %1277 = vmatpush1.msra.mxu0 0.0
  %1278 = vmatprep.subr.mxu0 0.0
  %1279 = vmatpush1.msra.mxu0 0.0
  %1280 = vmatprep.subr.mxu0 0.0
  %1281 = vmatpush1.msra.mxu0 0.0
  %1282 = vmatprep.subr.mxu0 0.0
  %1283 = vmatpush1.msra.mxu0 0.0
  %1284 = vmatprep.subr.mxu0 0.0
  %1285 = vmatpush1.msra.mxu0 0.0
  %1286 = vmatprep.subr.mxu0 0.0
  %1287 = vmatpush1.msra.mxu0 0.0
  %1288 = vmatprep.subr.mxu0 0.0
  %1289 = vmatpush1.msra.mxu0 0.0
  %1290 = vmatprep.subr.mxu0 0.0
  %1291 = vmatpush1.msra.mxu0 0.0
  %1292 = vmatprep.subr.mxu0 0.0
  %1293 = vmatpush1.msra.mxu0 0.0
  %1294 = vmatprep.subr.mxu0 0.0
  %1295 = vmatpush1.msra.mxu0 0.0
  %1296 = vmatprep.subr.mxu0 0.0
  %1297 = vmatpush1.msra.mxu0 0.0
  %1298 = vmatprep.subr.mxu0 0.0
  %1299 = vmatpush1.msra.mxu0 0.0
  %1300 = vmatprep.subr.mxu0 0.0
  %1301 = vmatpush1.msra.mxu0 0.0
  %1302 = vmatprep.mubr.f32.mxu0 0.0
  %1303 = vmatmul.mubr.f32.gmra.mrb[0].mxu0 %v1235
  %v1304 = vpop.f32.mrb[0].mxu0
  %v1305 = vadd.f32 0.0, %v1304
  %v1306 = vpop.f32.mrb[0].mxu0
  %1307 = vdwg.mxu0
  %v1308 = vadd.f32 %v1237, %v1305
  %v1309 = vmax.f32 %v1308, 0.0
  %1310 = vst [vmem:[%s485] sm:$0xff] %v1309
  %v1311 = vld [vmem:[%s560] sm:$0xff]
  %1312 = vmatprep.subr.mxu0 0.0
  %1313 = vmatpush1.msra.mxu0 %v802
  %1314 = vmatprep.subr.mxu0 0.0
  %1315 = vmatpush1.msra.mxu0 %v803
  %1316 = vmatprep.subr.mxu0 0.0
  %1317 = vmatpush1.msra.mxu0 %v804
  %1318 = vmatprep.subr.mxu0 0.0
  %1319 = vmatpush1.msra.mxu0 %v805
  %1320 = vmatprep.subr.mxu0 0.0
  %1321 = vmatpush1.msra.mxu0 %v806
  %1322 = vmatprep.subr.mxu0 0.0
  %1323 = vmatpush1.msra.mxu0 %v807
  %1324 = vmatprep.subr.mxu0 0.0
  %1325 = vmatpush1.msra.mxu0 %v808
  %1326 = vmatprep.subr.mxu0 0.0
  %1327 = vmatpush1.msra.mxu0 %v809
  %1328 = vmatprep.subr.mxu0 0.0
  %1329 = vmatpush1.msra.mxu0 %v810
  %1330 = vmatprep.subr.mxu0 0.0
  %1331 = vmatpush1.msra.mxu0 %v811
  %1332 = vmatprep.subr.mxu0 0.0
  %1333 = vmatpush1.msra.mxu0 %v812
  %1334 = vmatprep.subr.mxu0 0.0
  %1335 = vmatpush1.msra.mxu0 %v813
  %1336 = vmatprep.subr.mxu0 0.0
  %1337 = vmatpush1.msra.mxu0 %v814
  %1338 = vmatprep.subr.mxu0 0.0
  %1339 = vmatpush1.msra.mxu0 %v815
  %1340 = vmatprep.subr.mxu0 0.0
  %1341 = vmatpush1.msra.mxu0 %v816
  %1342 = vmatprep.subr.mxu0 0.0
  %1343 = vmatpush1.msra.mxu0 %v817
  %1344 = vmatprep.subr.mxu0 0.0
  %1345 = vmatpush1.msra.mxu0 0.0
  %1346 = vmatprep.subr.mxu0 0.0
  %1347 = vmatpush1.msra.mxu0 0.0
  %1348 = vmatprep.subr.mxu0 0.0
  %1349 = vmatpush1.msra.mxu0 0.0
  %1350 = vmatprep.subr.mxu0 0.0
  %1351 = vmatpush1.msra.mxu0 0.0
  %1352 = vmatprep.subr.mxu0 0.0
  %1353 = vmatpush1.msra.mxu0 0.0
  %1354 = vmatprep.subr.mxu0 0.0
  %1355 = vmatpush1.msra.mxu0 0.0
  %1356 = vmatprep.subr.mxu0 0.0
  %1357 = vmatpush1.msra.mxu0 0.0
  %1358 = vmatprep.subr.mxu0 0.0
  %1359 = vmatpush1.msra.mxu0 0.0
  %1360 = vmatprep.subr.mxu0 0.0
  %1361 = vmatpush1.msra.mxu0 0.0
  %1362 = vmatprep.subr.mxu0 0.0
  %1363 = vmatpush1.msra.mxu0 0.0
  %1364 = vmatprep.subr.mxu0 0.0
  %1365 = vmatpush1.msra.mxu0 0.0
  %1366 = vmatprep.subr.mxu0 0.0
  %1367 = vmatpush1.msra.mxu0 0.0
  %1368 = vmatprep.subr.mxu0 0.0
  %1369 = vmatpush1.msra.mxu0 0.0
  %1370 = vmatprep.subr.mxu0 0.0
  %1371 = vmatpush1.msra.mxu0 0.0
  %1372 = vmatprep.subr.mxu0 0.0
  %1373 = vmatpush1.msra.mxu0 0.0
  %1374 = vmatprep.subr.mxu0 0.0
  %1375 = vmatpush1.msra.mxu0 0.0
  %1376 = vmatprep.mubr.f32.mxu0 0.0
  %1377 = vmatmul.mubr.f32.gmra.mrb[0].mxu0 %v1309
  %v1378 = vpop.f32.mrb[0].mxu0
  %v1379 = vadd.f32 0.0, %v1378
  %v1380 = vpop.f32.mrb[0].mxu0
  %1381 = vdwg.mxu0
  %v1382 = vadd.f32 %v1311, %v1379
  %v1383 = vmax.f32 %v1382, 0.0
  %1384 = vst [vmem:[%s560] sm:$0xff] %v1383
  %v1385 = vld [vmem:[%s635] sm:$0xff]
  %1386 = vmatprep.subr.mxu0 0.0
  %1387 = vmatpush1.msra.mxu0 %v802
  %1388 = vmatprep.subr.mxu0 0.0
  %1389 = vmatpush1.msra.mxu0 %v803
  %1390 = vmatprep.subr.mxu0 0.0
  %1391 = vmatpush1.msra.mxu0 %v804
  %1392 = vmatprep.subr.mxu0 0.0
  %1393 = vmatpush1.msra.mxu0 %v805
  %1394 = vmatprep.subr.mxu0 0.0
  %1395 = vmatpush1.msra.mxu0 %v806
  %1396 = vmatprep.subr.mxu0 0.0
  %1397 = vmatpush1.msra.mxu0 %v807
  %1398 = vmatprep.subr.mxu0 0.0
  %1399 = vmatpush1.msra.mxu0 %v808
  %1400 = vmatprep.subr.mxu0 0.0
  %1401 = vmatpush1.msra.mxu0 %v809
  %1402 = vmatprep.subr.mxu0 0.0
  %1403 = vmatpush1.msra.mxu0 %v810
  %1404 = vmatprep.subr.mxu0 0.0
  %1405 = vmatpush1.msra.mxu0 %v811
  %1406 = vmatprep.subr.mxu0 0.0
  %1407 = vmatpush1.msra.mxu0 %v812
  %1408 = vmatprep.subr.mxu0 0.0
  %1409 = vmatpush1.msra.mxu0 %v813
  %1410 = vmatprep.subr.mxu0 0.0
  %1411 = vmatpush1.msra.mxu0 %v814
  %1412 = vmatprep.subr.mxu0 0.0
  %1413 = vmatpush1.msra.mxu0 %v815
  %1414 = vmatprep.subr.mxu0 0.0
  %1415 = vmatpush1.msra.mxu0 %v816
  %1416 = vmatprep.subr.mxu0 0.0
  %1417 = vmatpush1.msra.mxu0 %v817
  %1418 = vmatprep.subr.mxu0 0.0
  %1419 = vmatpush1.msra.mxu0 0.0
  %1420 = vmatprep.subr.mxu0 0.0
  %1421 = vmatpush1.msra.mxu0 0.0
  %1422 = vmatprep.subr.mxu0 0.0
  %1423 = vmatpush1.msra.mxu0 0.0
  %1424 = vmatprep.subr.mxu0 0.0
  %1425 = vmatpush1.msra.mxu0 0.0
  %1426 = vmatprep.subr.mxu0 0.0
  %1427 = vmatpush1.msra.mxu0 0.0
  %1428 = vmatprep.subr.mxu0 0.0
  %1429 = vmatpush1.msra.mxu0 0.0
  %1430 = vmatprep.subr.mxu0 0.0
  %1431 = vmatpush1.msra.mxu0 0.0
  %1432 = vmatprep.subr.mxu0 0.0
  %1433 = vmatpush1.msra.mxu0 0.0
  %1434 = vmatprep.subr.mxu0 0.0
  %1435 = vmatpush1.msra.mxu0 0.0
  %1436 = vmatprep.subr.mxu0 0.0
  %1437 = vmatpush1.msra.mxu0 0.0
  %1438 = vmatprep.subr.mxu0 0.0
  %1439 = vmatpush1.msra.mxu0 0.0
  %1440 = vmatprep.subr.mxu0 0.0
  %1441 = vmatpush1.msra.mxu0 0.0
  %1442 = vmatprep.subr.mxu0 0.0
  %1443 = vmatpush1.msra.mxu0 0.0
  %1444 = vmatprep.subr.mxu0 0.0
  %1445 = vmatpush1.msra.mxu0 0.0
  %1446 = vmatprep.subr.mxu0 0.0
  %1447 = vmatpush1.msra.mxu0 0.0
  %1448 = vmatprep.subr.mxu0 0.0
  %1449 = vmatpush1.msra.mxu0 0.0
  %1450 = vmatprep.mubr.f32.mxu0 0.0
  %1451 = vmatmul.mubr.f32.gmra.mrb[0].mxu0 %v1383
  %v1452 = vpop.f32.mrb[0].mxu0
  %v1453 = vadd.f32 0.0, %v1452
  %v1454 = vpop.f32.mrb[0].mxu0
  %1455 = vdwg.mxu0
  %v1456 = vadd.f32 %v1385, %v1453
  %v1457 = vmax.f32 %v1456, 0.0
  %1458 = vst [vmem:[%s635] sm:$0xff] %v1457
  %v1459 = vld [vmem:[%s710] sm:$0xff]
  %1460 = vmatprep.subr.mxu0 0.0
  %1461 = vmatpush1.msra.mxu0 %v802
  %1462 = vmatprep.subr.mxu0 0.0
  %1463 = vmatpush1.msra.mxu0 %v803
  %1464 = vmatprep.subr.mxu0 0.0
  %1465 = vmatpush1.msra.mxu0 %v804
  %1466 = vmatprep.subr.mxu0 0.0
  %1467 = vmatpush1.msra.mxu0 %v805
  %1468 = vmatprep.subr.mxu0 0.0
  %1469 = vmatpush1.msra.mxu0 %v806
  %1470 = vmatprep.subr.mxu0 0.0
  %1471 = vmatpush1.msra.mxu0 %v807
  %1472 = vmatprep.subr.mxu0 0.0
  %1473 = vmatpush1.msra.mxu0 %v808
  %1474 = vmatprep.subr.mxu0 0.0
  %1475 = vmatpush1.msra.mxu0 %v809
  %1476 = vmatprep.subr.mxu0 0.0
  %1477 = vmatpush1.msra.mxu0 %v810
  %1478 = vmatprep.subr.mxu0 0.0
  %1479 = vmatpush1.msra.mxu0 %v811
  %1480 = vmatprep.subr.mxu0 0.0
  %1481 = vmatpush1.msra.mxu0 %v812
  %1482 = vmatprep.subr.mxu0 0.0
  %1483 = vmatpush1.msra.mxu0 %v813
  %1484 = vmatprep.subr.mxu0 0.0
  %1485 = vmatpush1.msra.mxu0 %v814
  %1486 = vmatprep.subr.mxu0 0.0
  %1487 = vmatpush1.msra.mxu0 %v815
  %1488 = vmatprep.subr.mxu0 0.0
  %1489 = vmatpush1.msra.mxu0 %v816
  %1490 = vmatprep.subr.mxu0 0.0
  %1491 = vmatpush1.msra.mxu0 %v817
  %1492 = vmatprep.subr.mxu0 0.0
  %1493 = vmatpush1.msra.mxu0 0.0
  %1494 = vmatprep.subr.mxu0 0.0
  %1495 = vmatpush1.msra.mxu0 0.0
  %1496 = vmatprep.subr.mxu0 0.0
  %1497 = vmatpush1.msra.mxu0 0.0
  %1498 = vmatprep.subr.mxu0 0.0
  %1499 = vmatpush1.msra.mxu0 0.0
  %1500 = vmatprep.subr.mxu0 0.0
  %1501 = vmatpush1.msra.mxu0 0.0
  %1502 = vmatprep.subr.mxu0 0.0
  %1503 = vmatpush1.msra.mxu0 0.0
  %1504 = vmatprep.subr.mxu0 0.0
  %1505 = vmatpush1.msra.mxu0 0.0
  %1506 = vmatprep.subr.mxu0 0.0
  %1507 = vmatpush1.msra.mxu0 0.0
  %1508 = vmatprep.subr.mxu0 0.0
  %1509 = vmatpush1.msra.mxu0 0.0
  %1510 = vmatprep.subr.mxu0 0.0
  %1511 = vmatpush1.msra.mxu0 0.0
  %1512 = vmatprep.subr.mxu0 0.0
  %1513 = vmatpush1.msra.mxu0 0.0
  %1514 = vmatprep.subr.mxu0 0.0
  %1515 = vmatpush1.msra.mxu0 0.0
  %1516 = vmatprep.subr.mxu0 0.0
  %1517 = vmatpush1.msra.mxu0 0.0
  %1518 = vmatprep.subr.mxu0 0.0
  %1519 = vmatpush1.msra.mxu0 0.0
  %1520 = vmatprep.subr.mxu0 0.0
  %1521 = vmatpush1.msra.mxu0 0.0
  %1522 = vmatprep.subr.mxu0 0.0
  %1523 = vmatpush1.msra.mxu0 0.0
  %1524 = vmatprep.mubr.f32.mxu0 0.0
  %1525 = vmatmul.mubr.f32.gmra.mrb[0].mxu0 %v1457
  %v1526 = vpop.f32.mrb[0].mxu0
  %v1527 = vadd.f32 0.0, %v1526
  %v1528 = vpop.f32.mrb[0].mxu0
  %1529 = vdwg.mxu0
  %v1530 = vadd.f32 %v1459, %v1527
  %v1531 = vmax.f32 %v1530, 0.0
  %1532 = vst [vmem:[%s710] sm:$0xff] %v1531
  %1533 = vst [vmem:[%s939] sm:$0xff] %v1531
  %v1534 = vld [vmem:[#allocation2] sm:$0xff]
  %v1535 = vld [vmem:[#allocation2 + $0x8] sm:$0xff]
  %v1536 = vld [vmem:[#allocation2 + $0x10] sm:$0xff]
  %v1537 = vld [vmem:[#allocation2 + $0x18] sm:$0xff]
  %v1538 = vld [vmem:[#allocation2 + $0x20] sm:$0xff]
  %v1539 = vld [vmem:[#allocation2 + $0x28] sm:$0xff]
  %v1540 = vld [vmem:[#allocation2 + $0x30] sm:$0xff]
  %v1541 = vld [vmem:[#allocation2 + $0x38] sm:$0xff]
  %v1542 = vld [vmem:[%s5] sm:$0xff]
  %v1543 = vld [vmem:[%s5 + $0x8] sm:$0xff]
  %v1544 = vld [vmem:[%s5 + $0x10] sm:$0xff]
  %v1545 = vld [vmem:[%s5 + $0x18] sm:$0xff]
  %v1546 = vld [vmem:[%s5 + $0x20] sm:$0xff]
  %v1547 = vld [vmem:[%s5 + $0x28] sm:$0xff]
  %v1548 = vld [vmem:[%s5 + $0x30] sm:$0xff]
  %v1549 = vld [vmem:[%s5 + $0x38] sm:$0xff]
  %v1550 = vld [vmem:[%s5 + $0x40] sm:$0xff]
  %v1551 = vld [vmem:[%s5 + $0x48] sm:$0xff]
  %v1552 = vld [vmem:[%s5 + $0x50] sm:$0xff]
  %v1553 = vld [vmem:[%s5 + $0x58] sm:$0xff]
  %v1554 = vld [vmem:[%s5 + $0x60] sm:$0xff]
  %v1555 = vld [vmem:[%s5 + $0x68] sm:$0xff]
  %v1556 = vld [vmem:[%s5 + $0x70] sm:$0xff]
  %v1557 = vld [vmem:[%s5 + $0x78] sm:$0xff]
  %v1558 = vld [vmem:[%s6] sm:$0x1]
  %v1560 = vlaneseq
  %v1561 = vshrl.u32 %v1560, 7
  %v1562 = vsub.s32 0, %v1561
  %v1563 = vrot.slane %v1558, %v1562
  %1565 = vmatprep.subr.mxu0 0.0
  %1566 = vmatpush1.msra.mxu0 %v1542
  %1567 = vmatprep.subr.mxu0 0.0
  %1568 = vmatpush1.msra.mxu0 %v1543
  %1569 = vmatprep.subr.mxu0 0.0
  %1570 = vmatpush1.msra.mxu0 %v1544
  %1571 = vmatprep.subr.mxu0 0.0
  %1572 = vmatpush1.msra.mxu0 %v1545
  %1573 = vmatprep.subr.mxu0 0.0
  %1574 = vmatpush1.msra.mxu0 %v1546
  %1575 = vmatprep.subr.mxu0 0.0
  %1576 = vmatpush1.msra.mxu0 %v1547
  %1577 = vmatprep.subr.mxu0 0.0
  %1578 = vmatpush1.msra.mxu0 %v1548
  %1579 = vmatprep.subr.mxu0 0.0
  %1580 = vmatpush1.msra.mxu0 %v1549
  %1581 = vmatprep.subr.mxu0 0.0
  %1582 = vmatpush1.msra.mxu0 %v1550
  %1583 = vmatprep.subr.mxu0 0.0
  %1584 = vmatpush1.msra.mxu0 %v1551
  %1585 = vmatprep.subr.mxu0 0.0
  %1586 = vmatpush1.msra.mxu0 %v1552
  %1587 = vmatprep.subr.mxu0 0.0
  %1588 = vmatpush1.msra.mxu0 %v1553
  %1589 = vmatprep.subr.mxu0 0.0
  %1590 = vmatpush1.msra.mxu0 %v1554
  %1591 = vmatprep.subr.mxu0 0.0
  %1592 = vmatpush1.msra.mxu0 %v1555
  %1593 = vmatprep.subr.mxu0 0.0
  %1594 = vmatpush1.msra.mxu0 %v1556
  %1595 = vmatprep.subr.mxu0 0.0
  %1596 = vmatpush1.msra.mxu0 %v1557
  %1597 = vmatprep.subr.mxu0 0.0
  %1598 = vmatpush1.msra.mxu0 0.0
  %1599 = vmatprep.subr.mxu0 0.0
  %1600 = vmatpush1.msra.mxu0 0.0
  %1601 = vmatprep.subr.mxu0 0.0
  %1602 = vmatpush1.msra.mxu0 0.0
  %1603 = vmatprep.subr.mxu0 0.0
  %1604 = vmatpush1.msra.mxu0 0.0
  %1605 = vmatprep.subr.mxu0 0.0
  %1606 = vmatpush1.msra.mxu0 0.0
  %1607 = vmatprep.subr.mxu0 0.0
  %1608 = vmatpush1.msra.mxu0 0.0
  %1609 = vmatprep.subr.mxu0 0.0
  %1610 = vmatpush1.msra.mxu0 0.0
  %1611 = vmatprep.subr.mxu0 0.0
  %1612 = vmatpush1.msra.mxu0 0.0
  %1613 = vmatprep.subr.mxu0 0.0
  %1614 = vmatpush1.msra.mxu0 0.0
  %1615 = vmatprep.subr.mxu0 0.0
  %1616 = vmatpush1.msra.mxu0 0.0
  %1617 = vmatprep.subr.mxu0 0.0
  %1618 = vmatpush1.msra.mxu0 0.0
  %1619 = vmatprep.subr.mxu0 0.0
  %1620 = vmatpush1.msra.mxu0 0.0
  %1621 = vmatprep.subr.mxu0 0.0
  %1622 = vmatpush1.msra.mxu0 0.0
  %1623 = vmatprep.subr.mxu0 0.0
  %1624 = vmatpush1.msra.mxu0 0.0
  %1625 = vmatprep.subr.mxu0 0.0
  %1626 = vmatpush1.msra.mxu0 0.0
  %1627 = vmatprep.subr.mxu0 0.0
  %1628 = vmatpush1.msra.mxu0 0.0
  %1629 = vmatprep.mubr.f32.mxu0 0.0
  %1630 = vmatmul.mubr.f32.gmra.mrb[0].mxu0 %v1534
  %v1631 = vpop.f32.mrb[0].mxu0
  %v1632 = vadd.f32 %v1563, %v1631
  %v1633 = vpop.f32.mrb[0].mxu0
  %1634 = vmatprep.mubr.f32.mxu0 0.0
  %1635 = vmatmul.mubr.f32.gmra.mrb[0].mxu0 %v1535
  %v1636 = vpop.f32.mrb[0].mxu0
  %v1637 = vadd.f32 %v1563, %v1636
  %v1638 = vpop.f32.mrb[0].mxu0
  %1639 = vmatprep.mubr.f32.mxu0 0.0
  %1640 = vmatmul.mubr.f32.gmra.mrb[0].mxu0 %v1536
  %v1641 = vpop.f32.mrb[0].mxu0
  %v1642 = vadd.f32 %v1563, %v1641
  %v1643 = vpop.f32.mrb[0].mxu0
  %1644 = vmatprep.mubr.f32.mxu0 0.0
  %1645 = vmatmul.mubr.f32.gmra.mrb[0].mxu0 %v1537
  %v1646 = vpop.f32.mrb[0].mxu0
  %v1647 = vadd.f32 %v1563, %v1646
  %v1648 = vpop.f32.mrb[0].mxu0
  %1649 = vmatprep.mubr.f32.mxu0 0.0
  %1650 = vmatmul.mubr.f32.gmra.mrb[0].mxu0 %v1538
  %v1651 = vpop.f32.mrb[0].mxu0
  %v1652 = vadd.f32 %v1563, %v1651
  %v1653 = vpop.f32.mrb[0].mxu0
  %1654 = vmatprep.mubr.f32.mxu0 0.0
  %1655 = vmatmul.mubr.f32.gmra.mrb[0].mxu0 %v1539
  %v1656 = vpop.f32.mrb[0].mxu0
  %v1657 = vadd.f32 %v1563, %v1656
  %v1658 = vpop.f32.mrb[0].mxu0
  %1659 = vmatprep.mubr.f32.mxu0 0.0
  %1660 = vmatmul.mubr.f32.gmra.mrb[0].mxu0 %v1540
  %v1661 = vpop.f32.mrb[0].mxu0
  %v1662 = vadd.f32 %v1563, %v1661
  %v1663 = vpop.f32.mrb[0].mxu0
  %1664 = vmatprep.mubr.f32.mxu0 0.0
  %1665 = vmatmul.mubr.f32.gmra.mrb[0].mxu0 %v1541
  %v1666 = vpop.f32.mrb[0].mxu0
  %v1667 = vadd.f32 %v1563, %v1666
  %v1668 = vpop.f32.mrb[0].mxu0
  %1669 = vdwg.mxu0
  %v1670 = vlaneseq
  %v1671 = vand.u32 %v1670, 127
  %vm1672 = vcmp.lt.s32.totalorder %v1671, 10
  %v1673 = vsel %vm1672, %v1632, -1e+30
  %v1674 = vsel %vm1672, %v1637, -1e+30
  %v1675 = vsel %vm1672, %v1642, -1e+30
  %v1676 = vsel %vm1672, %v1647, -1e+30
  %v1677 = vsel %vm1672, %v1652, -1e+30
  %v1678 = vsel %vm1672, %v1657, -1e+30
  %v1679 = vsel %vm1672, %v1662, -1e+30
  %v1680 = vsel %vm1672, %v1667, -1e+30
  %1681 = vmax.xlane.f32.xlu0 %v1673
  %v1682 = vpop.xlane.xlu0 %1681
  %1683 = vmax.xlane.f32.xlu0 %v1674
  %v1684 = vpop.xlane.xlu0 %1683
  %1685 = vmax.xlane.f32.xlu0 %v1675
  %v1686 = vpop.xlane.xlu0 %1685
  %1687 = vmax.xlane.f32.xlu0 %v1676
  %v1688 = vpop.xlane.xlu0 %1687
  %1689 = vmax.xlane.f32.xlu0 %v1677
  %v1690 = vpop.xlane.xlu0 %1689
  %1691 = vmax.xlane.f32.xlu0 %v1678
  %v1692 = vpop.xlane.xlu0 %1691
  %1693 = vmax.xlane.f32.xlu0 %v1679
  %v1694 = vpop.xlane.xlu0 %1693
  %1695 = vmax.xlane.f32.xlu0 %v1680
  %v1696 = vpop.xlane.xlu0 %1695
  %v1697 = vsub.f32 %v1673, %v1682
  %v1698 = vsub.f32 %v1674, %v1684
  %v1699 = vsub.f32 %v1675, %v1686
  %v1700 = vsub.f32 %v1676, %v1688
  %v1701 = vsub.f32 %v1677, %v1690
  %v1702 = vsub.f32 %v1678, %v1692
  %v1703 = vsub.f32 %v1679, %v1694
  %v1704 = vsub.f32 %v1680, %v1696
  %v1705 = vmul.f32 %v1697, 1.442695
  %v1706 = vpow.pop %v1705
  %v1707 = vmul.f32 %v1698, 1.442695
  %v1708 = vpow.pop %v1707
  %v1709 = vmul.f32 %v1699, 1.442695
  %v1710 = vpow.pop %v1709
  %v1711 = vmul.f32 %v1700, 1.442695
  %v1712 = vpow.pop %v1711
  %v1713 = vmul.f32 %v1701, 1.442695
  %v1714 = vpow.pop %v1713
  %v1715 = vmul.f32 %v1702, 1.442695
  %v1716 = vpow.pop %v1715
  %v1717 = vmul.f32 %v1703, 1.442695
  %v1718 = vpow.pop %v1717
  %v1719 = vmul.f32 %v1704, 1.442695
  %v1720 = vpow.pop %v1719
  %1721 = vadd.xlane.f32.xlu0 %v1706
  %v1722 = vpop.xlane.xlu0 %1721
  %1723 = vadd.xlane.f32.xlu0 %v1708
  %v1724 = vpop.xlane.xlu0 %1723
  %1725 = vadd.xlane.f32.xlu0 %v1710
  %v1726 = vpop.xlane.xlu0 %1725
  %1727 = vadd.xlane.f32.xlu0 %v1712
  %v1728 = vpop.xlane.xlu0 %1727
  %1729 = vadd.xlane.f32.xlu0 %v1714
  %v1730 = vpop.xlane.xlu0 %1729
  %1731 = vadd.xlane.f32.xlu0 %v1716
  %v1732 = vpop.xlane.xlu0 %1731
  %1733 = vadd.xlane.f32.xlu0 %v1718
  %v1734 = vpop.xlane.xlu0 %1733
  %1735 = vadd.xlane.f32.xlu0 %v1720
  %v1736 = vpop.xlane.xlu0 %1735
  %v1737 = vlog2.pop %v1722
  %v1738 = vmul.f32 %v1737, 0.6931472
  %v1739 = vlog2.pop %v1724
  %v1740 = vmul.f32 %v1739, 0.6931472
  %v1741 = vlog2.pop %v1726
  %v1742 = vmul.f32 %v1741, 0.6931472
  %v1743 = vlog2.pop %v1728
  %v1744 = vmul.f32 %v1743, 0.6931472
  %v1745 = vlog2.pop %v1730
  %v1746 = vmul.f32 %v1745, 0.6931472
  %v1747 = vlog2.pop %v1732
  %v1748 = vmul.f32 %v1747, 0.6931472
  %v1749 = vlog2.pop %v1734
  %v1750 = vmul.f32 %v1749, 0.6931472
  %v1751 = vlog2.pop %v1736
  %v1752 = vmul.f32 %v1751, 0.6931472
  %v1753 = vsub.f32 %v1697, %v1738
  %v1754 = vsub.f32 %v1698, %v1740
  %v1755 = vsub.f32 %v1699, %v1742
  %v1756 = vsub.f32 %v1700, %v1744
  %v1757 = vsub.f32 %v1701, %v1746
  %v1758 = vsub.f32 %v1702, %v1748
  %v1759 = vsub.f32 %v1703, %v1750
  %v1760 = vsub.f32 %v1704, %v1752
  %1761 = vst [vmem:[%s7] sm:$0xff] %v1753
  %1762 = vst [vmem:[%s7 + $0x8] sm:$0xff] %v1754
  %1763 = vst [vmem:[%s7 + $0x10] sm:$0xff] %v1755
  %1764 = vst [vmem:[%s7 + $0x18] sm:$0xff] %v1756
  %1765 = vst [vmem:[%s7 + $0x20] sm:$0xff] %v1757
  %1766 = vst [vmem:[%s7 + $0x28] sm:$0xff] %v1758
  %1767 = vst [vmem:[%s7 + $0x30] sm:$0xff] %v1759
  %1768 = vst [vmem:[%s7 + $0x38] sm:$0xff] %v1760
  // Predicated region
  $region34: #{rnn_model_forward.1} parent=0 // pred_check
    _
  $region35: #{rnn_model_forward.1} parent=0 // pred_check_branch
    %1770 = sbr.rel (0) target = $region37
  $region36: #{rnn_model_forward.1} parent=0 // pred_region
    _
  $region37: #{rnn_model_forward.1} parent=0 // pred_fallthru
    _
  // Predicated region
  $region38: #{rnn_model_forward.1} parent=0 // pred_check
    _
  $region39: #{rnn_model_forward.1} parent=0 // pred_check_branch
    %1772 = sbr.rel (0) target = $region41
  $region40: #{rnn_model_forward.1} parent=0 // pred_region
    _
  $region41: #{rnn_model_forward.1} parent=0 // pred_fallthru
    _

</llo_original>
